<compile_context>
chip_gen: v7x
topology: tpu7x:2x2x1
jax: 0.10.0
libtpu: 0.0.40
codegen_flags: <defaults>
</compile_context>

<pallas_src>
import functools

import jax
import jax.numpy as jnp
from jax.experimental import pallas as pl
from jax.experimental.pallas import tpu as pltpu

N_LAYERS = 6
RELU_FLAGS = (True, False, True, True, True, False)  # ce0, ce1, fused0..3


def _round_up(x, m):
    return ((x + m - 1) // m) * m


# ----------------------------------------------------------------------------
# Kernel
# ----------------------------------------------------------------------------
def cub_encoder_kernel(x_ref, w_ref, b_ref, out_ref, *, in_feat, cp_output):
    """One batch tile through all 6 (fused) layers.

    x_ref:   [TB, in_feat] f32  raw input (cast to bf16 in-kernel)
    w_ref:   [6, F, F]     bf16 packed/fused weights (VMEM-resident)
    b_ref:   [6, 1, F]     f32  packed/fused biases  (VMEM-resident)
    out_ref: [TB, F]       bf16 lanes [0:cp_output]              = sigmoid(c_logits)
                                lanes [cp_output:cp_output+emb]  = tuple embedding
    """
    h = x_ref[...].astype(jnp.bfloat16)            # in-kernel cast (no host pad/cast pass)

    # Layer 0: contract against only the first in_feat rows of the 128-wide
    # weight slab (static ref slice -> zero runtime cost).
    y = jnp.dot(h, w_ref[0, :in_feat, :], preferred_element_type=jnp.float32)
    y = y + b_ref[0]                               # f32 bias add (VPU)
    y = jnp.maximum(y, 0.0)                        # f32 ReLU (VPU)

    for layer in range(1, N_LAYERS):               # small, fully unrolled
        h = y.astype(jnp.bfloat16)                 # bf16 for next MXU push
        y = jnp.dot(h, w_ref[layer], preferred_element_type=jnp.float32)
        y = y + b_ref[layer]
        if RELU_FLAGS[layer]:
            y = jnp.maximum(y, 0.0)

    # Lane-dense single-slab write: sigmoid only on the concept-logit lanes.
    lane = jax.lax.broadcasted_iota(jnp.int32, y.shape, 1)
    out_ref[...] = jnp.where(lane < cp_output, jax.nn.sigmoid(y), y).astype(out_ref.dtype)


# ----------------------------------------------------------------------------
# Host-side parameter prep (done once): fuse branches + pack into two slabs
# ----------------------------------------------------------------------------
def init_params(key, input_size, emb_size, cp_output):
    """PyTorch-style init U(-1/sqrt(fan_in), 1/sqrt(fan_in)); W stored [in, out]."""
    dims = {
        "ce": [(input_size, emb_size), (emb_size, emb_size)],
        "cp": [(emb_size, emb_size)] * 3 + [(emb_size, cp_output)],
        "te": [(emb_size, emb_size)] * 4,
    }
    params = {}
    for name, layer_dims in dims.items():
        ws, bs = [], []
        for fan_in, fan_out in layer_dims:
            key, kw, kb = jax.random.split(key, 3)
            bound = 1.0 / (fan_in ** 0.5)
            ws.append(jax.random.uniform(kw, (fan_in, fan_out), jnp.float32, -bound, bound))
            bs.append(jax.random.uniform(kb, (1, fan_out), jnp.float32, -bound, bound))
        params[name] = (ws, bs)
    return params


def pack_params(params, input_size, emb_size, cp_output):
    """Pack the 10 Linear layers into [6, F, F] (bf16) + [6, 1, F] (f32) slabs.

    F is padded to a multiple of 128 (lane-dense everywhere).
    concept_predictor / tuple_embedder are fused block-diagonally:
      layer 2: [cp_w0 | te_w0]                       (both read the embedding)
      layer 3,4: [cp_wi 0; 0 te_wi]
      layer 5: cp_w3 -> lanes [0:cp_output], te_w3 -> lanes [cp_output:cp_output+e]
    """
    e = emb_size
    F = _round_up(max(input_size, 2 * e, e + cp_output), 128)
    assert F % 128 == 0

    (ce_w, ce_b) = params["ce"]
    (cp_w, cp_b) = params["cp"]
    (te_w, te_b) = params["te"]

    W = jnp.zeros((N_LAYERS, F, F), jnp.float32)
    B = jnp.zeros((N_LAYERS, 1, F), jnp.float32)

    # concept_encoder (embedding lives in lanes [0:e])
    W = W.at[0, :input_size, :e].set(ce_w[0]); B = B.at[0, :, :e].set(ce_b[0])
    W = W.at[1, :e, :e].set(ce_w[1]);          B = B.at[1, :, :e].set(ce_b[1])

    # fused layer 0: [cp_w0 | te_w0]
    W = W.at[2, :e, :e].set(cp_w[0])
    W = W.at[2, :e, e:2 * e].set(te_w[0])
    B = B.at[2, :, :e].set(cp_b[0])
    B = B.at[2, :, e:2 * e].set(te_b[0])

    # fused middle layers: block-diagonal
    for layer, idx in ((3, 1), (4, 2)):
        W = W.at[layer, :e, :e].set(cp_w[idx])
        W = W.at[layer, e:2 * e, e:2 * e].set(te_w[idx])
        B = B.at[layer, :, :e].set(cp_b[idx])
        B = B.at[layer, :, e:2 * e].set(te_b[idx])

    # fused final layer
    W = W.at[5, :e, :cp_output].set(cp_w[3])
    W = W.at[5, e:2 * e, cp_output:cp_output + e].set(te_w[3])
    B = B.at[5, :, :cp_output].set(cp_b[3])
    B = B.at[5, :, cp_output:cp_output + e].set(te_b[3])

    # bf16 weights for the MXU; biases stay f32 (added on the f32 accumulator).
    return W.astype(jnp.bfloat16), B


# ----------------------------------------------------------------------------
# Pallas wrapper
# ----------------------------------------------------------------------------
@functools.partial(jax.jit, static_argnames=(
    "emb_size", "cp_output", "batch_tile", "num_cores", "out_dtype"))
def cub_encoder_forward(x, w_slab, b_slab, *, emb_size, cp_output,
                        batch_tile=512, num_cores=1, out_dtype=jnp.bfloat16):
    batch, in_feat = x.shape
    n_layers, _, F = w_slab.shape

    # Batch tile: whole batch for small inputs (grid=1 on single-TC v5e/v6e),
    # split into >= num_cores parallel steps otherwise (pass num_cores=2 on v7x
    # so the ("parallel",) grid axis is sharded across both TensorCores).
    per_core = pl.cdiv(batch, num_cores)
    tb = max(16, min(_round_up(batch_tile, 16), _round_up(per_core, 16)))
    padded = _round_up(batch, tb)
    grid = padded // tb

    # Only the batch dim is padded (single fused pad op; no feature pad/cast pass).
    xp = x if padded == batch else jnp.pad(x, ((0, padded - batch), (0, 0)))

    out_itemsize = jnp.dtype(out_dtype).itemsize
    cost = pl.CostEstimate(
        flops=2 * padded * (in_feat * F + (n_layers - 1) * F * F),
        transcendentals=padded * F,
        bytes_accessed=(padded * in_feat * x.dtype.itemsize
                        + w_slab.size * w_slab.dtype.itemsize
                        + b_slab.size * b_slab.dtype.itemsize
                        + padded * F * out_itemsize),
    )

    # Generous VMEM estimate (double-buffered tiles + resident params + f32
    # intermediates), set explicitly so batch_tile sweeps can't silently blow
    # past v7x's smaller (64 MiB physical) VMEM.
    vmem_est = (2 * tb * in_feat * x.dtype.itemsize
                + 2 * tb * F * out_itemsize
                + 2 * w_slab.size * w_slab.dtype.itemsize
                + 2 * b_slab.size * b_slab.dtype.itemsize
                + 8 * tb * F * 4)
    vmem_limit = int(min(max(2 * vmem_est, 8 * 2**20), 48 * 2**20))

    out = pl.pallas_call(
        functools.partial(cub_encoder_kernel, in_feat=in_feat, cp_output=cp_output),
        out_shape=jax.ShapeDtypeStruct((padded, F), out_dtype),
        grid=(grid,),
        in_specs=[
            pl.BlockSpec((tb, in_feat), lambda i: (i, 0)),          # activations: tiled
            pl.BlockSpec((n_layers, F, F), lambda i: (0, 0, 0)),    # weights: resident
            pl.BlockSpec((n_layers, 1, F), lambda i: (0, 0, 0)),    # biases:  resident
        ],
        out_specs=pl.BlockSpec((tb, F), lambda i: (i, 0)),
        compiler_params=pltpu.CompilerParams(
            dimension_semantics=("parallel",),       # megacore sharding on v7x
            vmem_limit_bytes=vmem_limit),
        cost_estimate=cost,
    )(xp, w_slab, b_slab)

    c_probs = out[:batch, :cp_output]
    emb = out[:batch, cp_output:cp_output + emb_size]
    return c_probs, emb


# ----------------------------------------------------------------------------
# References
# ----------------------------------------------------------------------------
def reference_forward(x, params, matmul_dtype=jnp.float32):
    """Module semantics.  matmul_dtype=bf16 mirrors the kernel's MXU precision."""
    def lin(h, w, b, relu):
        y = jnp.dot(h.astype(matmul_dtype), w.astype(matmul_dtype),
                    preferred_element_type=jnp.float32) + b
        return jnp.maximum(y, 0.0) if relu else y

    def mlp(h, ws, bs, relu_mask):
        for w, b, r in zip(ws, bs, relu_mask):
            h = lin(h, w, b, r)
        return h

    embeddings = mlp(x, *params["ce"], relu_mask=[True, False])
    c_logits = mlp(embeddings, *params["cp"], relu_mask=[True, True, True, False])
    c_probs = jax.nn.sigmoid(c_logits)
    tup = mlp(embeddings, *params["te"], relu_mask=[True, True, True, False])
    return c_probs, tup


if __name__ == "__main__":
    input_size, emb_size, cp_output = 32, 32, 16
    batch = 256

    key = jax.random.PRNGKey(0)
    key, kx = jax.random.split(key)
    x = jax.random.normal(kx, (batch, input_size), jnp.float32)
    params = init_params(key, input_size, emb_size, cp_output)
    w_slab, b_slab = pack_params(params, input_size, emb_size, cp_output)

    # Default path: one 256-row tile, grid=1 (v5e/v6e small-batch recommendation).
    c_probs, emb = cub_encoder_forward(
        x, w_slab, b_slab, emb_size=emb_size, cp_output=cp_output)
    jax.block_until_ready((c_probs, emb))

    assert c_probs.shape == (batch, cp_output)
    assert emb.shape == (batch, emb_size)

    cp32 = c_probs.astype(jnp.float32)
    em32 = emb.astype(jnp.float32)

    # Structural check: identical bf16-operand / f32-accumulate math in plain JAX
    # (bf16 output rounding is the only extra error source).
    mir_probs, mir_emb = reference_forward(x, params, matmul_dtype=jnp.bfloat16)
    assert jnp.allclose(cp32, mir_probs, atol=2e-2, rtol=2e-2), \
        float(jnp.max(jnp.abs(cp32 - mir_probs)))
    assert jnp.allclose(em32, mir_emb, atol=2e-2, rtol=2e-2), \
        float(jnp.max(jnp.abs(em32 - mir_emb)))

    # Sanity check vs the full-f32 module semantics (bf16 MXU + bf16 output trade
    # a little precision for ~2x MXU rate and half the output HBM traffic).
    ref_probs, ref_emb = reference_forward(x, params, matmul_dtype=jnp.float32)
    assert jnp.allclose(cp32, ref_probs, atol=6e-2), \
        float(jnp.max(jnp.abs(cp32 - ref_probs)))
    assert jnp.allclose(em32, ref_emb, atol=6e-2), \
        float(jnp.max(jnp.abs(em32 - ref_emb)))

    # Multi-step path (what num_cores=2 on v7x uses): 2 parallel 128-row tiles.
    c2, e2 = cub_encoder_forward(
        x, w_slab, b_slab, emb_size=emb_size, cp_output=cp_output, num_cores=2)
    jax.block_until_ready((c2, e2))
    assert jnp.allclose(c2.astype(jnp.float32), cp32, atol=1e-6)
    assert jnp.allclose(e2.astype(jnp.float32), em32, atol=1e-6)

    print("KERNEL_OK")
</pallas_src>

<mosaic_0001>
module attributes {stable_mosaic.version = 11 : i64} {
  func.func @cub_encoder_kernel(%arg0: i32, %arg1: memref<256x32xf32, #tpu.memory_space<vmem>>, %arg2: memref<6x128x128xbf16, #tpu.memory_space<vmem>>, %arg3: memref<6x1x128xf32, #tpu.memory_space<vmem>>, %arg4: memref<256x128xbf16, #tpu.memory_space<vmem>>) attributes {dimension_semantics = [#tpu.dimension_semantics<parallel>], iteration_bounds = array<i64: 1>, scalar_prefetch = 0 : i64, scratch_operands = 0 : i64, tpu.core_type = #tpu.core_type<tc>, window_params = [{transform_indices = @transform_0, window_bounds = array<i64: 256, 32>}, {pipeline_mode = #tpu.pipeline_mode<synchronous>, transform_indices = @transform_1, window_bounds = array<i64: 6, 128, 128>}, {pipeline_mode = #tpu.pipeline_mode<synchronous>, transform_indices = @transform_2, window_bounds = array<i64: 6, 1, 128>}, {transform_indices = @transform_3, window_bounds = array<i64: 256, 128>}]} {
    %c0 = arith.constant 0 : index
    %c0_0 = arith.constant 0 : index
    %0 = vector.load %arg1[%c0, %c0_0] : memref<256x32xf32, #tpu.memory_space<vmem>>, vector<256x32xf32>
    %1 = arith.truncf %0 : vector<256x32xf32> to vector<256x32xbf16>
    %c0_1 = arith.constant 0 : index
    %c0_2 = arith.constant 0 : index
    %c0_3 = arith.constant 0 : index
    %2 = vector.load %arg2[%c0_1, %c0_2, %c0_3] : memref<6x128x128xbf16, #tpu.memory_space<vmem>>, vector<1x32x128xbf16>
    %3 = vector.shape_cast %2 : vector<1x32x128xbf16> to vector<32x128xbf16>
    %cst = arith.constant dense<0.000000e+00> : vector<256x128xf32>
    %4 = tpu.matmul %1, %3, %cst {dimension_numbers = #tpu.dot_dimension_numbers<[1], [0], [0], [1], [0, 0, 1, 1], [], []>} : vector<256x32xbf16>, vector<32x128xbf16>, vector<256x128xf32> -> vector<256x128xf32>
    %c0_4 = arith.constant 0 : index
    %c0_5 = arith.constant 0 : index
    %c0_6 = arith.constant 0 : index
    %5 = vector.load %arg3[%c0_4, %c0_5, %c0_6] : memref<6x1x128xf32, #tpu.memory_space<vmem>>, vector<1x1x128xf32>
    %6 = vector.shape_cast %5 : vector<1x1x128xf32> to vector<1x128xf32>
    %7 = vector.broadcast %6 : vector<1x128xf32> to vector<256x128xf32>
    %8 = arith.addf %4, %7 : vector<256x128xf32>
    %cst_7 = arith.constant 0.000000e+00 : f32
    %9 = vector.broadcast %cst_7 : f32 to vector<256x128xf32>
    %10 = arith.maximumf %8, %9 : vector<256x128xf32>
    %11 = arith.truncf %10 : vector<256x128xf32> to vector<256x128xbf16>
    %c1 = arith.constant 1 : index
    %c0_8 = arith.constant 0 : index
    %c0_9 = arith.constant 0 : index
    %12 = vector.load %arg2[%c1, %c0_8, %c0_9] : memref<6x128x128xbf16, #tpu.memory_space<vmem>>, vector<1x128x128xbf16>
    %13 = vector.shape_cast %12 : vector<1x128x128xbf16> to vector<128x128xbf16>
    %cst_10 = arith.constant dense<0.000000e+00> : vector<256x128xf32>
    %14 = tpu.matmul %11, %13, %cst_10 {dimension_numbers = #tpu.dot_dimension_numbers<[1], [0], [0], [1], [0, 0, 1, 1], [], []>} : vector<256x128xbf16>, vector<128x128xbf16>, vector<256x128xf32> -> vector<256x128xf32>
    %c1_11 = arith.constant 1 : index
    %c0_12 = arith.constant 0 : index
    %c0_13 = arith.constant 0 : index
    %15 = vector.load %arg3[%c1_11, %c0_12, %c0_13] : memref<6x1x128xf32, #tpu.memory_space<vmem>>, vector<1x1x128xf32>
    %16 = vector.shape_cast %15 : vector<1x1x128xf32> to vector<1x128xf32>
    %17 = vector.broadcast %16 : vector<1x128xf32> to vector<256x128xf32>
    %18 = arith.addf %14, %17 : vector<256x128xf32>
    %19 = arith.truncf %18 : vector<256x128xf32> to vector<256x128xbf16>
    %c2 = arith.constant 2 : index
    %c0_14 = arith.constant 0 : index
    %c0_15 = arith.constant 0 : index
    %20 = vector.load %arg2[%c2, %c0_14, %c0_15] : memref<6x128x128xbf16, #tpu.memory_space<vmem>>, vector<1x128x128xbf16>
    %21 = vector.shape_cast %20 : vector<1x128x128xbf16> to vector<128x128xbf16>
    %cst_16 = arith.constant dense<0.000000e+00> : vector<256x128xf32>
    %22 = tpu.matmul %19, %21, %cst_16 {dimension_numbers = #tpu.dot_dimension_numbers<[1], [0], [0], [1], [0, 0, 1, 1], [], []>} : vector<256x128xbf16>, vector<128x128xbf16>, vector<256x128xf32> -> vector<256x128xf32>
    %c2_17 = arith.constant 2 : index
    %c0_18 = arith.constant 0 : index
    %c0_19 = arith.constant 0 : index
    %23 = vector.load %arg3[%c2_17, %c0_18, %c0_19] : memref<6x1x128xf32, #tpu.memory_space<vmem>>, vector<1x1x128xf32>
    %24 = vector.shape_cast %23 : vector<1x1x128xf32> to vector<1x128xf32>
    %25 = vector.broadcast %24 : vector<1x128xf32> to vector<256x128xf32>
    %26 = arith.addf %22, %25 : vector<256x128xf32>
    %cst_20 = arith.constant 0.000000e+00 : f32
    %27 = vector.broadcast %cst_20 : f32 to vector<256x128xf32>
    %28 = arith.maximumf %26, %27 : vector<256x128xf32>
    %29 = arith.truncf %28 : vector<256x128xf32> to vector<256x128xbf16>
    %c3 = arith.constant 3 : index
    %c0_21 = arith.constant 0 : index
    %c0_22 = arith.constant 0 : index
    %30 = vector.load %arg2[%c3, %c0_21, %c0_22] : memref<6x128x128xbf16, #tpu.memory_space<vmem>>, vector<1x128x128xbf16>
    %31 = vector.shape_cast %30 : vector<1x128x128xbf16> to vector<128x128xbf16>
    %cst_23 = arith.constant dense<0.000000e+00> : vector<256x128xf32>
    %32 = tpu.matmul %29, %31, %cst_23 {dimension_numbers = #tpu.dot_dimension_numbers<[1], [0], [0], [1], [0, 0, 1, 1], [], []>} : vector<256x128xbf16>, vector<128x128xbf16>, vector<256x128xf32> -> vector<256x128xf32>
    %c3_24 = arith.constant 3 : index
    %c0_25 = arith.constant 0 : index
    %c0_26 = arith.constant 0 : index
    %33 = vector.load %arg3[%c3_24, %c0_25, %c0_26] : memref<6x1x128xf32, #tpu.memory_space<vmem>>, vector<1x1x128xf32>
    %34 = vector.shape_cast %33 : vector<1x1x128xf32> to vector<1x128xf32>
    %35 = vector.broadcast %34 : vector<1x128xf32> to vector<256x128xf32>
    %36 = arith.addf %32, %35 : vector<256x128xf32>
    %cst_27 = arith.constant 0.000000e+00 : f32
    %37 = vector.broadcast %cst_27 : f32 to vector<256x128xf32>
    %38 = arith.maximumf %36, %37 : vector<256x128xf32>
    %39 = arith.truncf %38 : vector<256x128xf32> to vector<256x128xbf16>
    %c4 = arith.constant 4 : index
    %c0_28 = arith.constant 0 : index
    %c0_29 = arith.constant 0 : index
    %40 = vector.load %arg2[%c4, %c0_28, %c0_29] : memref<6x128x128xbf16, #tpu.memory_space<vmem>>, vector<1x128x128xbf16>
    %41 = vector.shape_cast %40 : vector<1x128x128xbf16> to vector<128x128xbf16>
    %cst_30 = arith.constant dense<0.000000e+00> : vector<256x128xf32>
    %42 = tpu.matmul %39, %41, %cst_30 {dimension_numbers = #tpu.dot_dimension_numbers<[1], [0], [0], [1], [0, 0, 1, 1], [], []>} : vector<256x128xbf16>, vector<128x128xbf16>, vector<256x128xf32> -> vector<256x128xf32>
    %c4_31 = arith.constant 4 : index
    %c0_32 = arith.constant 0 : index
    %c0_33 = arith.constant 0 : index
    %43 = vector.load %arg3[%c4_31, %c0_32, %c0_33] : memref<6x1x128xf32, #tpu.memory_space<vmem>>, vector<1x1x128xf32>
    %44 = vector.shape_cast %43 : vector<1x1x128xf32> to vector<1x128xf32>
    %45 = vector.broadcast %44 : vector<1x128xf32> to vector<256x128xf32>
    %46 = arith.addf %42, %45 : vector<256x128xf32>
    %cst_34 = arith.constant 0.000000e+00 : f32
    %47 = vector.broadcast %cst_34 : f32 to vector<256x128xf32>
    %48 = arith.maximumf %46, %47 : vector<256x128xf32>
    %49 = arith.truncf %48 : vector<256x128xf32> to vector<256x128xbf16>
    %c5 = arith.constant 5 : index
    %c0_35 = arith.constant 0 : index
    %c0_36 = arith.constant 0 : index
    %50 = vector.load %arg2[%c5, %c0_35, %c0_36] : memref<6x128x128xbf16, #tpu.memory_space<vmem>>, vector<1x128x128xbf16>
    %51 = vector.shape_cast %50 : vector<1x128x128xbf16> to vector<128x128xbf16>
    %cst_37 = arith.constant dense<0.000000e+00> : vector<256x128xf32>
    %52 = tpu.matmul %49, %51, %cst_37 {dimension_numbers = #tpu.dot_dimension_numbers<[1], [0], [0], [1], [0, 0, 1, 1], [], []>} : vector<256x128xbf16>, vector<128x128xbf16>, vector<256x128xf32> -> vector<256x128xf32>
    %c5_38 = arith.constant 5 : index
    %c0_39 = arith.constant 0 : index
    %c0_40 = arith.constant 0 : index
    %53 = vector.load %arg3[%c5_38, %c0_39, %c0_40] : memref<6x1x128xf32, #tpu.memory_space<vmem>>, vector<1x1x128xf32>
    %54 = vector.shape_cast %53 : vector<1x1x128xf32> to vector<1x128xf32>
    %55 = vector.broadcast %54 : vector<1x128xf32> to vector<256x128xf32>
    %56 = arith.addf %52, %55 : vector<256x128xf32>
    %57 = tpu.iota {dimensions = array<i32: 1>} : vector<256x128xi32>
    %c16_i32 = arith.constant 16 : i32
    %58 = vector.broadcast %c16_i32 : i32 to vector<256x128xi32>
    %59 = arith.cmpi slt, %57, %58 : vector<256x128xi32>
    %60 = arith.negf %56 : vector<256x128xf32>
    %61 = math.exp %60 : vector<256x128xf32>
    %cst_41 = arith.constant 1.000000e+00 : f32
    %62 = vector.broadcast %cst_41 : f32 to vector<256x128xf32>
    %63 = arith.addf %62, %61 : vector<256x128xf32>
    %64 = arith.divf %62, %63 : vector<256x128xf32>
    %65 = arith.select %59, %64, %56 : vector<256x128xi1>, vector<256x128xf32>
    %66 = arith.truncf %65 : vector<256x128xf32> to vector<256x128xbf16>
    %c0_42 = arith.constant 0 : index
    %c0_43 = arith.constant 0 : index
    %67 = vector.load %arg4[%c0_42, %c0_43] : memref<256x128xbf16, #tpu.memory_space<vmem>>, vector<256x128xbf16>
    tpu.vector_store %arg4[%c0_42, %c0_43], %66 {strides = array<i32>} : memref<256x128xbf16, #tpu.memory_space<vmem>>, vector<256x128xbf16>,
    return
  }
  func.func @transform_0(%arg0: i32) -> (i32, i32) {
    %c0_i32 = arith.constant 0 : i32
    %c0_i32_0 = arith.constant 0 : i32
    return %arg0, %c0_i32 : i32, i32
  }
  func.func @transform_1(%arg0: i32) -> (i32, i32, i32) {
    %c0_i32 = arith.constant 0 : i32
    %c0_i32_0 = arith.constant 0 : i32
    %c0_i32_1 = arith.constant 0 : i32
    %c0_i32_2 = arith.constant 0 : i32
    return %c0_i32, %c0_i32_0, %c0_i32_1 : i32, i32, i32
  }
  func.func @transform_2(%arg0: i32) -> (i32, i32, i32) {
    %c0_i32 = arith.constant 0 : i32
    %c0_i32_0 = arith.constant 0 : i32
    %c0_i32_1 = arith.constant 0 : i32
    %c0_i32_2 = arith.constant 0 : i32
    return %c0_i32, %c0_i32_0, %c0_i32_1 : i32, i32, i32
  }
  func.func @transform_3(%arg0: i32) -> (i32, i32) {
    %c0_i32 = arith.constant 0 : i32
    %c0_i32_0 = arith.constant 0 : i32
    return %arg0, %c0_i32 : i32, i32
  }
}

</mosaic_0001>

<llo_original>
// kernel: cub_encoder_forward.1
$region0: #{cub_encoder_forward.1}
  #allocation0 [shape = 'u32[]', space=smem, size = 0x4, offset = 0x4, fixed_abs, tag = 'smem constant byte address 0x4 - core index']
  #allocation1 [shape = 'u32[144,128]{1,0:T(1,128)}', space=vmem, size = 0x12000, scoped, tag = 'internal scratch']
  %s0 = inlined_call_operand.vmem [shape: f32[256,32], index: 0, kind: input, shape index: {}]
  %s1 = inlined_call_operand.hbm [shape: bf16[6,128,128], index: 1, kind: input, shape index: {}]
  %s2 = inlined_call_operand.vmem [shape: f32[6,1,128], index: 2, kind: input, shape index: {}]
  %s3 = inlined_call_operand.vmem [shape: bf16[256,128], index: 3, kind: output, shape index: {}]
  %s4 = sld [smem:[#allocation0]]
  $region26: #{cub_encoder_forward.1} parent=0
    _
  %s6 = ssub.s32 1, %s4
  %s7 = scalar_select 0, %s6, %s4
  $region1: #{cub_encoder_forward.1} parent=0
    #allocation2 [shape = 'u8[196608]{0}', space=vmem, size = 0x30000, scoped, tag = 'input window, operand 1, single buffered']
    #allocation3 [shape = 's32[1]{0}', space=sflag, size = 0x4, scoped, tag = 'scoped memory for cub_encoder_forward.1']
    %8 = vsyncpa [#allocation3], 0
    // Predicated region
    $region2: #{cub_encoder_forward.1} parent=1 // pred_check
      _
    $region3: #{cub_encoder_forward.1} parent=1 // pred_check_branch
      %10 = sbr.rel (0) target = $region5
    $region4: #{cub_encoder_forward.1} parent=1 // pred_region
      _
    $region5: #{cub_encoder_forward.1} parent=1 // pred_fallthru
      _
    // Predicated region
    $region6: #{cub_encoder_forward.1} parent=1 // pred_check
      _
    $region7: #{cub_encoder_forward.1} parent=1 // pred_check_branch
      %12 = sbr.rel (0) target = $region9
    $region8: #{cub_encoder_forward.1} parent=1 // pred_region
      %s14 = ssub.s32 6144, 6144
      %15 = vsyncadd [#allocation3], %s14
      %s16 = sshll.u32 [#allocation2], 4
      %s17 = int_to_ptr.vmem [resolvable:$true] %s16
      %22 = dma.hbm_to_vmem [thread:$0]  %s1, 6144, %s17, [#allocation3], 64, 64, 4
    $region9: #{cub_encoder_forward.1} parent=1 // pred_fallthru
      _
    // Predicated region
    $region10: #{cub_encoder_forward.1} parent=1 // pred_check
      _
    $region11: #{cub_encoder_forward.1} parent=1 // pred_check_branch
      %24 = sbr.rel (0) target = $region13
    $region12: #{cub_encoder_forward.1} parent=1 // pred_region
      _
    $region13: #{cub_encoder_forward.1} parent=1 // pred_fallthru
      _
    // Predicated region
    $region14: #{cub_encoder_forward.1} parent=1 // pred_check
      _
    $region15: #{cub_encoder_forward.1} parent=1 // pred_check_branch
      %26 = sbr.rel (0) target = $region17
    $region16: #{cub_encoder_forward.1} parent=1 // pred_region
      %27 = dma.done [#allocation3], 6144
    $region17: #{cub_encoder_forward.1} parent=1 // pred_fallthru
      _
    %v29 = vld [vmem:[%s0] sm:$0xff]
    %v30 = vld [vmem:[%s0 + $0x8] sm:$0xff]
    %v31 = vld [vmem:[%s0 + $0x10] sm:$0xff]
    %v32 = vld [vmem:[%s0 + $0x18] sm:$0xff]
    %v33 = vld [vmem:[%s0 + $0x20] sm:$0xff]
    %v34 = vld [vmem:[%s0 + $0x28] sm:$0xff]
    %v35 = vld [vmem:[%s0 + $0x30] sm:$0xff]
    %v36 = vld [vmem:[%s0 + $0x38] sm:$0xff]
    %v37 = vld [vmem:[%s0 + $0x40] sm:$0xff]
    %v38 = vld [vmem:[%s0 + $0x48] sm:$0xff]
    %v39 = vld [vmem:[%s0 + $0x50] sm:$0xff]
    %v40 = vld [vmem:[%s0 + $0x58] sm:$0xff]
    %v41 = vld [vmem:[%s0 + $0x60] sm:$0xff]
    %v42 = vld [vmem:[%s0 + $0x68] sm:$0xff]
    %v43 = vld [vmem:[%s0 + $0x70] sm:$0xff]
    %v44 = vld [vmem:[%s0 + $0x78] sm:$0xff]
    %v45 = vld [vmem:[%s0 + $0x80] sm:$0xff]
    %v46 = vld [vmem:[%s0 + $0x88] sm:$0xff]
    %v47 = vld [vmem:[%s0 + $0x90] sm:$0xff]
    %v48 = vld [vmem:[%s0 + $0x98] sm:$0xff]
    %v49 = vld [vmem:[%s0 + $0xa0] sm:$0xff]
    %v50 = vld [vmem:[%s0 + $0xa8] sm:$0xff]
    %v51 = vld [vmem:[%s0 + $0xb0] sm:$0xff]
    %v52 = vld [vmem:[%s0 + $0xb8] sm:$0xff]
    %v53 = vld [vmem:[%s0 + $0xc0] sm:$0xff]
    %v54 = vld [vmem:[%s0 + $0xc8] sm:$0xff]
    %v55 = vld [vmem:[%s0 + $0xd0] sm:$0xff]
    %v56 = vld [vmem:[%s0 + $0xd8] sm:$0xff]
    %v57 = vld [vmem:[%s0 + $0xe0] sm:$0xff]
    %v58 = vld [vmem:[%s0 + $0xe8] sm:$0xff]
    %v59 = vld [vmem:[%s0 + $0xf0] sm:$0xff]
    %v60 = vld [vmem:[%s0 + $0xf8] sm:$0xff]
    %v61 = vpack.c.bf16 %v30, %v29
    %v62 = vpack.c.bf16 %v32, %v31
    %v63 = vpack.c.bf16 %v34, %v33
    %v64 = vpack.c.bf16 %v36, %v35
    %v65 = vpack.c.bf16 %v38, %v37
    %v66 = vpack.c.bf16 %v40, %v39
    %v67 = vpack.c.bf16 %v42, %v41
    %v68 = vpack.c.bf16 %v44, %v43
    %v69 = vpack.c.bf16 %v46, %v45
    %v70 = vpack.c.bf16 %v48, %v47
    %v71 = vpack.c.bf16 %v50, %v49
    %v72 = vpack.c.bf16 %v52, %v51
    %v73 = vpack.c.bf16 %v54, %v53
    %v74 = vpack.c.bf16 %v56, %v55
    %v75 = vpack.c.bf16 %v58, %v57
    %v76 = vpack.c.bf16 %v60, %v59
    %v77 = vld [vmem:[#allocation2] sm:$0xf]
    %v78 = vld [vmem:[#allocation2 + $0x4] sm:$0xf]
    %v79 = vld [vmem:[#allocation2 + $0x8] sm:$0xf]
    %v80 = vld [vmem:[#allocation2 + $0xc] sm:$0xf]
    %v81 = vld [vmem:[%s2] sm:$0x1]
    %v83 = vlaneseq
    %v84 = vshrl.u32 %v83, 7
    %v85 = vsub.s32 0, %v84
    %v86 = vrot.slane %v81, %v85
    %v92 = vunpack.c.l.b16 %v77
    %v93 = vunpack.c.l.b16 %v78
    %v94 = vunpack.c.l.b16 %v79
    %v95 = vunpack.c.l.b16 %v80
    %v96 = vpack.c.b16 %v93, %v92
    %v97 = vpack.c.b16 %v95, %v94
    %vm100 = vcmask 261120
    %v102 = vsel %vm100, %v61, 0
    %v105 = vsel %vm100, %v62, 0
    %v108 = vsel %vm100, %v63, 0
    %v111 = vsel %vm100, %v64, 0
    %v114 = vsel %vm100, %v65, 0
    %v117 = vsel %vm100, %v66, 0
    %v120 = vsel %vm100, %v67, 0
    %v123 = vsel %vm100, %v68, 0
    %v126 = vsel %vm100, %v69, 0
    %v129 = vsel %vm100, %v70, 0
    %v132 = vsel %vm100, %v71, 0
    %v135 = vsel %vm100, %v72, 0
    %v138 = vsel %vm100, %v73, 0
    %v141 = vsel %vm100, %v74, 0
    %v144 = vsel %vm100, %v75, 0
    %v147 = vsel %vm100, %v76, 0
    %149 = vmatprep.subr.bf16.mxu0 0
    %150 = vmatpush1.bf16.msra.mxu0 %v96
    %151 = vmatprep.subr.bf16.mxu0 0
    %152 = vmatpush1.bf16.msra.mxu0 %v97
    %153 = vmatprep.subr.bf16.mxu0 0
    %154 = vmatpush1.bf16.msra.mxu0 0
    %155 = vmatprep.subr.bf16.mxu0 0
    %156 = vmatpush1.bf16.msra.mxu0 0
    %157 = vmatprep.subr.bf16.mxu0 0
    %158 = vmatpush1.bf16.msra.mxu0 0
    %159 = vmatprep.subr.bf16.mxu0 0
    %160 = vmatpush1.bf16.msra.mxu0 0
    %161 = vmatprep.subr.bf16.mxu0 0
    %162 = vmatpush1.bf16.msra.mxu0 0
    %163 = vmatprep.subr.bf16.mxu0 0
    %164 = vmatpush1.bf16.msra.mxu0 0
    %165 = vmatprep.subr.bf16.mxu0 0
    %166 = vmatpush1.bf16.msra.mxu0 0
    %167 = vmatprep.subr.bf16.mxu0 0
    %168 = vmatpush1.bf16.msra.mxu0 0
    %169 = vmatprep.subr.bf16.mxu0 0
    %170 = vmatpush1.bf16.msra.mxu0 0
    %171 = vmatprep.subr.bf16.mxu0 0
    %172 = vmatpush1.bf16.msra.mxu0 0
    %173 = vmatprep.subr.bf16.mxu0 0
    %174 = vmatpush1.bf16.msra.mxu0 0
    %175 = vmatprep.subr.bf16.mxu0 0
    %176 = vmatpush1.bf16.msra.mxu0 0
    %177 = vmatprep.subr.bf16.mxu0 0
    %178 = vmatpush1.bf16.msra.mxu0 0
    %179 = vmatprep.subr.bf16.mxu0 0
    %180 = vmatpush1.bf16.msra.mxu0 0
    %181 = vmatprep.mubr.bf16.mxu0 0
    %182 = vmatmul.mubr.bf16.gmra.mrb[0].mxu0 %v102
    %v183 = vpop.f32.mrb[0].mxu0
    %v184 = vadd.f32 %v86, %v183
    %v185 = vpop.f32.mrb[0].mxu0
    %v186 = vpop.f32.mrb[0].mxu0
    %v187 = vadd.f32 %v86, %v186
    %v188 = vpop.f32.mrb[0].mxu0
    %189 = vmatprep.mubr.bf16.mxu0 0
    %190 = vmatmul.mubr.bf16.gmra.mrb[0].mxu0 %v105
    %v191 = vpop.f32.mrb[0].mxu0
    %v192 = vadd.f32 %v86, %v191
    %v193 = vpop.f32.mrb[0].mxu0
    %v194 = vpop.f32.mrb[0].mxu0
    %v195 = vadd.f32 %v86, %v194
    %v196 = vpop.f32.mrb[0].mxu0
    %197 = vmatprep.mubr.bf16.mxu0 0
    %198 = vmatmul.mubr.bf16.gmra.mrb[0].mxu0 %v108
    %v199 = vpop.f32.mrb[0].mxu0
    %v200 = vadd.f32 %v86, %v199
    %v201 = vpop.f32.mrb[0].mxu0
    %v202 = vpop.f32.mrb[0].mxu0
    %v203 = vadd.f32 %v86, %v202
    %v204 = vpop.f32.mrb[0].mxu0
    %205 = vmatprep.mubr.bf16.mxu0 0
    %206 = vmatmul.mubr.bf16.gmra.mrb[0].mxu0 %v111
    %v207 = vpop.f32.mrb[0].mxu0
    %v208 = vadd.f32 %v86, %v207
    %v209 = vpop.f32.mrb[0].mxu0
    %v210 = vpop.f32.mrb[0].mxu0
    %v211 = vadd.f32 %v86, %v210
    %v212 = vpop.f32.mrb[0].mxu0
    %213 = vmatprep.mubr.bf16.mxu0 0
    %214 = vmatmul.mubr.bf16.gmra.mrb[0].mxu0 %v114
    %v215 = vpop.f32.mrb[0].mxu0
    %v216 = vadd.f32 %v86, %v215
    %v217 = vpop.f32.mrb[0].mxu0
    %v218 = vpop.f32.mrb[0].mxu0
    %v219 = vadd.f32 %v86, %v218
    %v220 = vpop.f32.mrb[0].mxu0
    %221 = vmatprep.mubr.bf16.mxu0 0
    %222 = vmatmul.mubr.bf16.gmra.mrb[0].mxu0 %v117
    %v223 = vpop.f32.mrb[0].mxu0
    %v224 = vadd.f32 %v86, %v223
    %v225 = vpop.f32.mrb[0].mxu0
    %v226 = vpop.f32.mrb[0].mxu0
    %v227 = vadd.f32 %v86, %v226
    %v228 = vpop.f32.mrb[0].mxu0
    %229 = vmatprep.mubr.bf16.mxu0 0
    %230 = vmatmul.mubr.bf16.gmra.mrb[0].mxu0 %v120
    %v231 = vpop.f32.mrb[0].mxu0
    %v232 = vadd.f32 %v86, %v231
    %v233 = vpop.f32.mrb[0].mxu0
    %v234 = vpop.f32.mrb[0].mxu0
    %v235 = vadd.f32 %v86, %v234
    %v236 = vpop.f32.mrb[0].mxu0
    %237 = vmatprep.mubr.bf16.mxu0 0
    %238 = vmatmul.mubr.bf16.gmra.mrb[0].mxu0 %v123
    %v239 = vpop.f32.mrb[0].mxu0
    %v240 = vadd.f32 %v86, %v239
    %v241 = vpop.f32.mrb[0].mxu0
    %v242 = vpop.f32.mrb[0].mxu0
    %v243 = vadd.f32 %v86, %v242
    %v244 = vpop.f32.mrb[0].mxu0
    %245 = vmatprep.mubr.bf16.mxu0 0
    %246 = vmatmul.mubr.bf16.gmra.mrb[0].mxu0 %v126
    %v247 = vpop.f32.mrb[0].mxu0
    %v248 = vadd.f32 %v86, %v247
    %v249 = vpop.f32.mrb[0].mxu0
    %v250 = vpop.f32.mrb[0].mxu0
    %v251 = vadd.f32 %v86, %v250
    %v252 = vpop.f32.mrb[0].mxu0
    %253 = vmatprep.mubr.bf16.mxu0 0
    %254 = vmatmul.mubr.bf16.gmra.mrb[0].mxu0 %v129
    %v255 = vpop.f32.mrb[0].mxu0
    %v256 = vadd.f32 %v86, %v255
    %v257 = vpop.f32.mrb[0].mxu0
    %v258 = vpop.f32.mrb[0].mxu0
    %v259 = vadd.f32 %v86, %v258
    %v260 = vpop.f32.mrb[0].mxu0
    %261 = vmatprep.mubr.bf16.mxu0 0
    %262 = vmatmul.mubr.bf16.gmra.mrb[0].mxu0 %v132
    %v263 = vpop.f32.mrb[0].mxu0
    %v264 = vadd.f32 %v86, %v263
    %v265 = vpop.f32.mrb[0].mxu0
    %v266 = vpop.f32.mrb[0].mxu0
    %v267 = vadd.f32 %v86, %v266
    %v268 = vpop.f32.mrb[0].mxu0
    %269 = vmatprep.mubr.bf16.mxu0 0
    %270 = vmatmul.mubr.bf16.gmra.mrb[0].mxu0 %v135
    %v271 = vpop.f32.mrb[0].mxu0
    %v272 = vadd.f32 %v86, %v271
    %v273 = vpop.f32.mrb[0].mxu0
    %v274 = vpop.f32.mrb[0].mxu0
    %v275 = vadd.f32 %v86, %v274
    %v276 = vpop.f32.mrb[0].mxu0
    %277 = vmatprep.mubr.bf16.mxu0 0
    %278 = vmatmul.mubr.bf16.gmra.mrb[0].mxu0 %v138
    %v279 = vpop.f32.mrb[0].mxu0
    %v280 = vadd.f32 %v86, %v279
    %v281 = vpop.f32.mrb[0].mxu0
    %v282 = vpop.f32.mrb[0].mxu0
    %v283 = vadd.f32 %v86, %v282
    %v284 = vpop.f32.mrb[0].mxu0
    %285 = vmatprep.mubr.bf16.mxu0 0
    %286 = vmatmul.mubr.bf16.gmra.mrb[0].mxu0 %v141
    %v287 = vpop.f32.mrb[0].mxu0
    %v288 = vadd.f32 %v86, %v287
    %v289 = vpop.f32.mrb[0].mxu0
    %v290 = vpop.f32.mrb[0].mxu0
    %v291 = vadd.f32 %v86, %v290
    %v292 = vpop.f32.mrb[0].mxu0
    %293 = vmatprep.mubr.bf16.mxu0 0
    %294 = vmatmul.mubr.bf16.gmra.mrb[0].mxu0 %v144
    %v295 = vpop.f32.mrb[0].mxu0
    %v296 = vadd.f32 %v86, %v295
    %v297 = vpop.f32.mrb[0].mxu0
    %v298 = vpop.f32.mrb[0].mxu0
    %v299 = vadd.f32 %v86, %v298
    %v300 = vpop.f32.mrb[0].mxu0
    %301 = vmatprep.mubr.bf16.mxu0 0
    %302 = vmatmul.mubr.bf16.gmra.mrb[0].mxu0 %v147
    %v303 = vpop.f32.mrb[0].mxu0
    %v304 = vadd.f32 %v86, %v303
    %v305 = vpop.f32.mrb[0].mxu0
    %v306 = vpop.f32.mrb[0].mxu0
    %v307 = vadd.f32 %v86, %v306
    %v308 = vpop.f32.mrb[0].mxu0
    %309 = vdwg.mxu0
    %v310 = vmax.f32 %v184, 0.0
    %v311 = vmax.f32 %v187, 0.0
    %v312 = vmax.f32 %v192, 0.0
    %v313 = vmax.f32 %v195, 0.0
    %v314 = vmax.f32 %v200, 0.0
    %v315 = vmax.f32 %v203, 0.0
    %v316 = vmax.f32 %v208, 0.0
    %v317 = vmax.f32 %v211, 0.0
    %v318 = vmax.f32 %v216, 0.0
    %v319 = vmax.f32 %v219, 0.0
    %v320 = vmax.f32 %v224, 0.0
    %v321 = vmax.f32 %v227, 0.0
    %v322 = vmax.f32 %v232, 0.0
    %v323 = vmax.f32 %v235, 0.0
    %v324 = vmax.f32 %v240, 0.0
    %v325 = vmax.f32 %v243, 0.0
    %v326 = vmax.f32 %v248, 0.0
    %v327 = vmax.f32 %v251, 0.0
    %v328 = vmax.f32 %v256, 0.0
    %v329 = vmax.f32 %v259, 0.0
    %v330 = vmax.f32 %v264, 0.0
    %v331 = vmax.f32 %v267, 0.0
    %v332 = vmax.f32 %v272, 0.0
    %v333 = vmax.f32 %v275, 0.0
    %v334 = vmax.f32 %v280, 0.0
    %v335 = vmax.f32 %v283, 0.0
    %v336 = vmax.f32 %v288, 0.0
    %v337 = vmax.f32 %v291, 0.0
    %v338 = vmax.f32 %v296, 0.0
    %v339 = vmax.f32 %v299, 0.0
    %v340 = vmax.f32 %v304, 0.0
    %v341 = vmax.f32 %v307, 0.0
    %v342 = vpack.c.bf16 %v311, %v310
    %v343 = vpack.c.bf16 %v313, %v312
    %v344 = vpack.c.bf16 %v315, %v314
    %v345 = vpack.c.bf16 %v317, %v316
    %v346 = vpack.c.bf16 %v319, %v318
    %v347 = vpack.c.bf16 %v321, %v320
    %v348 = vpack.c.bf16 %v323, %v322
    %v349 = vpack.c.bf16 %v325, %v324
    %v350 = vpack.c.bf16 %v327, %v326
    %v351 = vpack.c.bf16 %v329, %v328
    %v352 = vpack.c.bf16 %v331, %v330
    %v353 = vpack.c.bf16 %v333, %v332
    %v354 = vpack.c.bf16 %v335, %v334
    %v355 = vpack.c.bf16 %v337, %v336
    %v356 = vpack.c.bf16 %v339, %v338
    %v357 = vpack.c.bf16 %v341, %v340
    %s358 = scalar_lea.vmem [#allocation2], 64
    %v359 = vld [vmem:[%s358] sm:$0xf]
    %v360 = vld [vmem:[%s358 + $0x4] sm:$0xf]
    %v361 = vld [vmem:[%s358 + $0x8] sm:$0xf]
    %v362 = vld [vmem:[%s358 + $0xc] sm:$0xf]
    %v363 = vld [vmem:[%s358 + $0x10] sm:$0xf]
    %v364 = vld [vmem:[%s358 + $0x14] sm:$0xf]
    %v365 = vld [vmem:[%s358 + $0x18] sm:$0xf]
    %v366 = vld [vmem:[%s358 + $0x1c] sm:$0xf]
    %v367 = vld [vmem:[%s358 + $0x20] sm:$0xf]
    %v368 = vld [vmem:[%s358 + $0x24] sm:$0xf]
    %v369 = vld [vmem:[%s358 + $0x28] sm:$0xf]
    %v370 = vld [vmem:[%s358 + $0x2c] sm:$0xf]
    %v371 = vld [vmem:[%s358 + $0x30] sm:$0xf]
    %v372 = vld [vmem:[%s358 + $0x34] sm:$0xf]
    %v373 = vld [vmem:[%s358 + $0x38] sm:$0xf]
    %v374 = vld [vmem:[%s358 + $0x3c] sm:$0xf]
    %s375 = scalar_lea.vmem %s2, 1
    %v376 = vld [vmem:[%s375] sm:$0x1]
    %v378 = vlaneseq
    %v379 = vshrl.u32 %v378, 7
    %v380 = vsub.s32 0, %v379
    %v381 = vrot.slane %v376, %v380
    %v399 = vunpack.c.l.b16 %v359
    %v400 = vunpack.c.l.b16 %v360
    %v401 = vunpack.c.l.b16 %v361
    %v402 = vunpack.c.l.b16 %v362
    %v403 = vunpack.c.l.b16 %v363
    %v404 = vunpack.c.l.b16 %v364
    %v405 = vunpack.c.l.b16 %v365
    %v406 = vunpack.c.l.b16 %v366
    %v407 = vunpack.c.l.b16 %v367
    %v408 = vunpack.c.l.b16 %v368
    %v409 = vunpack.c.l.b16 %v369
    %v410 = vunpack.c.l.b16 %v370
    %v411 = vunpack.c.l.b16 %v371
    %v412 = vunpack.c.l.b16 %v372
    %v413 = vunpack.c.l.b16 %v373
    %v414 = vunpack.c.l.b16 %v374
    %v415 = vpack.c.b16 %v400, %v399
    %v416 = vpack.c.b16 %v402, %v401
    %v417 = vpack.c.b16 %v404, %v403
    %v418 = vpack.c.b16 %v406, %v405
    %v419 = vpack.c.b16 %v408, %v407
    %v420 = vpack.c.b16 %v410, %v409
    %v421 = vpack.c.b16 %v412, %v411
    %v422 = vpack.c.b16 %v414, %v413
    %431 = vmatprep.subr.bf16.mxu0 0
    %432 = vmatpush1.bf16.msra.mxu0 %v415
    %433 = vmatprep.subr.bf16.mxu0 0
    %434 = vmatpush1.bf16.msra.mxu0 %v416
    %435 = vmatprep.subr.bf16.mxu0 0
    %436 = vmatpush1.bf16.msra.mxu0 %v417
    %437 = vmatprep.subr.bf16.mxu0 0
    %438 = vmatpush1.bf16.msra.mxu0 %v418
    %439 = vmatprep.subr.bf16.mxu0 0
    %440 = vmatpush1.bf16.msra.mxu0 %v419
    %441 = vmatprep.subr.bf16.mxu0 0
    %442 = vmatpush1.bf16.msra.mxu0 %v420
    %443 = vmatprep.subr.bf16.mxu0 0
    %444 = vmatpush1.bf16.msra.mxu0 %v421
    %445 = vmatprep.subr.bf16.mxu0 0
    %446 = vmatpush1.bf16.msra.mxu0 %v422
    %447 = vmatprep.subr.bf16.mxu0 0
    %448 = vmatpush1.bf16.msra.mxu0 0
    %449 = vmatprep.subr.bf16.mxu0 0
    %450 = vmatpush1.bf16.msra.mxu0 0
    %451 = vmatprep.subr.bf16.mxu0 0
    %452 = vmatpush1.bf16.msra.mxu0 0
    %453 = vmatprep.subr.bf16.mxu0 0
    %454 = vmatpush1.bf16.msra.mxu0 0
    %455 = vmatprep.subr.bf16.mxu0 0
    %456 = vmatpush1.bf16.msra.mxu0 0
    %457 = vmatprep.subr.bf16.mxu0 0
    %458 = vmatpush1.bf16.msra.mxu0 0
    %459 = vmatprep.subr.bf16.mxu0 0
    %460 = vmatpush1.bf16.msra.mxu0 0
    %461 = vmatprep.subr.bf16.mxu0 0
    %462 = vmatpush1.bf16.msra.mxu0 0
    %463 = vmatprep.mubr.bf16.mxu0 0
    %464 = vmatmul.mubr.bf16.gmra.mrb[0].mxu0 %v342
    %v465 = vpop.f32.mrb[0].mxu0
    %v466 = vadd.f32 %v381, %v465
    %v467 = vpop.f32.mrb[0].mxu0
    %v468 = vpop.f32.mrb[0].mxu0
    %v469 = vadd.f32 %v381, %v468
    %v470 = vpop.f32.mrb[0].mxu0
    %471 = vmatprep.mubr.bf16.mxu0 0
    %472 = vmatmul.mubr.bf16.gmra.mrb[0].mxu0 %v343
    %v473 = vpop.f32.mrb[0].mxu0
    %v474 = vadd.f32 %v381, %v473
    %v475 = vpop.f32.mrb[0].mxu0
    %v476 = vpop.f32.mrb[0].mxu0
    %v477 = vadd.f32 %v381, %v476
    %v478 = vpop.f32.mrb[0].mxu0
    %479 = vmatprep.mubr.bf16.mxu0 0
    %480 = vmatmul.mubr.bf16.gmra.mrb[0].mxu0 %v344
    %v481 = vpop.f32.mrb[0].mxu0
    %v482 = vadd.f32 %v381, %v481
    %v483 = vpop.f32.mrb[0].mxu0
    %v484 = vpop.f32.mrb[0].mxu0
    %v485 = vadd.f32 %v381, %v484
    %v486 = vpop.f32.mrb[0].mxu0
    %487 = vmatprep.mubr.bf16.mxu0 0
    %488 = vmatmul.mubr.bf16.gmra.mrb[0].mxu0 %v345
    %v489 = vpop.f32.mrb[0].mxu0
    %v490 = vadd.f32 %v381, %v489
    %v491 = vpop.f32.mrb[0].mxu0
    %v492 = vpop.f32.mrb[0].mxu0
    %v493 = vadd.f32 %v381, %v492
    %v494 = vpop.f32.mrb[0].mxu0
    %495 = vmatprep.mubr.bf16.mxu0 0
    %496 = vmatmul.mubr.bf16.gmra.mrb[0].mxu0 %v346
    %v497 = vpop.f32.mrb[0].mxu0
    %v498 = vadd.f32 %v381, %v497
    %v499 = vpop.f32.mrb[0].mxu0
    %v500 = vpop.f32.mrb[0].mxu0
    %v501 = vadd.f32 %v381, %v500
    %v502 = vpop.f32.mrb[0].mxu0
    %503 = vmatprep.mubr.bf16.mxu0 0
    %504 = vmatmul.mubr.bf16.gmra.mrb[0].mxu0 %v347
    %v505 = vpop.f32.mrb[0].mxu0
    %v506 = vadd.f32 %v381, %v505
    %v507 = vpop.f32.mrb[0].mxu0
    %v508 = vpop.f32.mrb[0].mxu0
    %v509 = vadd.f32 %v381, %v508
    %v510 = vpop.f32.mrb[0].mxu0
    %511 = vmatprep.mubr.bf16.mxu0 0
    %512 = vmatmul.mubr.bf16.gmra.mrb[0].mxu0 %v348
    %v513 = vpop.f32.mrb[0].mxu0
    %v514 = vadd.f32 %v381, %v513
    %v515 = vpop.f32.mrb[0].mxu0
    %v516 = vpop.f32.mrb[0].mxu0
    %v517 = vadd.f32 %v381, %v516
    %v518 = vpop.f32.mrb[0].mxu0
    %519 = vmatprep.mubr.bf16.mxu0 0
    %520 = vmatmul.mubr.bf16.gmra.mrb[0].mxu0 %v349
    %v521 = vpop.f32.mrb[0].mxu0
    %v522 = vadd.f32 %v381, %v521
    %v523 = vpop.f32.mrb[0].mxu0
    %v524 = vpop.f32.mrb[0].mxu0
    %v525 = vadd.f32 %v381, %v524
    %v526 = vpop.f32.mrb[0].mxu0
    %527 = vmatprep.mubr.bf16.mxu0 0
    %528 = vmatmul.mubr.bf16.gmra.mrb[0].mxu0 %v350
    %v529 = vpop.f32.mrb[0].mxu0
    %v530 = vadd.f32 %v381, %v529
    %v531 = vpop.f32.mrb[0].mxu0
    %v532 = vpop.f32.mrb[0].mxu0
    %v533 = vadd.f32 %v381, %v532
    %v534 = vpop.f32.mrb[0].mxu0
    %535 = vmatprep.mubr.bf16.mxu0 0
    %536 = vmatmul.mubr.bf16.gmra.mrb[0].mxu0 %v351
    %v537 = vpop.f32.mrb[0].mxu0
    %v538 = vadd.f32 %v381, %v537
    %v539 = vpop.f32.mrb[0].mxu0
    %v540 = vpop.f32.mrb[0].mxu0
    %v541 = vadd.f32 %v381, %v540
    %v542 = vpop.f32.mrb[0].mxu0
    %543 = vmatprep.mubr.bf16.mxu0 0
    %544 = vmatmul.mubr.bf16.gmra.mrb[0].mxu0 %v352
    %v545 = vpop.f32.mrb[0].mxu0
    %v546 = vadd.f32 %v381, %v545
    %v547 = vpop.f32.mrb[0].mxu0
    %v548 = vpop.f32.mrb[0].mxu0
    %v549 = vadd.f32 %v381, %v548
    %v550 = vpop.f32.mrb[0].mxu0
    %551 = vmatprep.mubr.bf16.mxu0 0
    %552 = vmatmul.mubr.bf16.gmra.mrb[0].mxu0 %v353
    %v553 = vpop.f32.mrb[0].mxu0
    %v554 = vadd.f32 %v381, %v553
    %v555 = vpop.f32.mrb[0].mxu0
    %v556 = vpop.f32.mrb[0].mxu0
    %v557 = vadd.f32 %v381, %v556
    %v558 = vpop.f32.mrb[0].mxu0
    %559 = vmatprep.mubr.bf16.mxu0 0
    %560 = vmatmul.mubr.bf16.gmra.mrb[0].mxu0 %v354
    %v561 = vpop.f32.mrb[0].mxu0
    %v562 = vadd.f32 %v381, %v561
    %v563 = vpop.f32.mrb[0].mxu0
    %v564 = vpop.f32.mrb[0].mxu0
    %v565 = vadd.f32 %v381, %v564
    %v566 = vpop.f32.mrb[0].mxu0
    %567 = vmatprep.mubr.bf16.mxu0 0
    %568 = vmatmul.mubr.bf16.gmra.mrb[0].mxu0 %v355
    %v569 = vpop.f32.mrb[0].mxu0
    %v570 = vadd.f32 %v381, %v569
    %v571 = vpop.f32.mrb[0].mxu0
    %v572 = vpop.f32.mrb[0].mxu0
    %v573 = vadd.f32 %v381, %v572
    %v574 = vpop.f32.mrb[0].mxu0
    %575 = vmatprep.mubr.bf16.mxu0 0
    %576 = vmatmul.mubr.bf16.gmra.mrb[0].mxu0 %v356
    %v577 = vpop.f32.mrb[0].mxu0
    %v578 = vadd.f32 %v381, %v577
    %v579 = vpop.f32.mrb[0].mxu0
    %v580 = vpop.f32.mrb[0].mxu0
    %v581 = vadd.f32 %v381, %v580
    %v582 = vpop.f32.mrb[0].mxu0
    %583 = vmatprep.mubr.bf16.mxu0 0
    %584 = vmatmul.mubr.bf16.gmra.mrb[0].mxu0 %v357
    %v585 = vpop.f32.mrb[0].mxu0
    %v586 = vadd.f32 %v381, %v585
    %v587 = vpop.f32.mrb[0].mxu0
    %v588 = vpop.f32.mrb[0].mxu0
    %v589 = vadd.f32 %v381, %v588
    %v590 = vpop.f32.mrb[0].mxu0
    %591 = vdwg.mxu0
    %v592 = vpack.c.bf16 %v469, %v466
    %v593 = vpack.c.bf16 %v477, %v474
    %v594 = vpack.c.bf16 %v485, %v482
    %v595 = vpack.c.bf16 %v493, %v490
    %v596 = vpack.c.bf16 %v501, %v498
    %v597 = vpack.c.bf16 %v509, %v506
    %v598 = vpack.c.bf16 %v517, %v514
    %v599 = vpack.c.bf16 %v525, %v522
    %v600 = vpack.c.bf16 %v533, %v530
    %v601 = vpack.c.bf16 %v541, %v538
    %v602 = vpack.c.bf16 %v549, %v546
    %v603 = vpack.c.bf16 %v557, %v554
    %v604 = vpack.c.bf16 %v565, %v562
    %v605 = vpack.c.bf16 %v573, %v570
    %v606 = vpack.c.bf16 %v581, %v578
    %v607 = vpack.c.bf16 %v589, %v586
    %s608 = scalar_lea.vmem [#allocation2], 128
    %v609 = vld [vmem:[%s608] sm:$0xf]
    %v610 = vld [vmem:[%s608 + $0x4] sm:$0xf]
    %v611 = vld [vmem:[%s608 + $0x8] sm:$0xf]
    %v612 = vld [vmem:[%s608 + $0xc] sm:$0xf]
    %v613 = vld [vmem:[%s608 + $0x10] sm:$0xf]
    %v614 = vld [vmem:[%s608 + $0x14] sm:$0xf]
    %v615 = vld [vmem:[%s608 + $0x18] sm:$0xf]
    %v616 = vld [vmem:[%s608 + $0x1c] sm:$0xf]
    %v617 = vld [vmem:[%s608 + $0x20] sm:$0xf]
    %v618 = vld [vmem:[%s608 + $0x24] sm:$0xf]
    %v619 = vld [vmem:[%s608 + $0x28] sm:$0xf]
    %v620 = vld [vmem:[%s608 + $0x2c] sm:$0xf]
    %v621 = vld [vmem:[%s608 + $0x30] sm:$0xf]
    %v622 = vld [vmem:[%s608 + $0x34] sm:$0xf]
    %v623 = vld [vmem:[%s608 + $0x38] sm:$0xf]
    %v624 = vld [vmem:[%s608 + $0x3c] sm:$0xf]
    %s625 = scalar_lea.vmem %s2, 2
    %v626 = vld [vmem:[%s625] sm:$0x1]
    %v628 = vlaneseq
    %v629 = vshrl.u32 %v628, 7
    %v630 = vsub.s32 0, %v629
    %v631 = vrot.slane %v626, %v630
    %v649 = vunpack.c.l.b16 %v609
    %v650 = vunpack.c.l.b16 %v610
    %v651 = vunpack.c.l.b16 %v611
    %v652 = vunpack.c.l.b16 %v612
    %v653 = vunpack.c.l.b16 %v613
    %v654 = vunpack.c.l.b16 %v614
    %v655 = vunpack.c.l.b16 %v615
    %v656 = vunpack.c.l.b16 %v616
    %v657 = vunpack.c.l.b16 %v617
    %v658 = vunpack.c.l.b16 %v618
    %v659 = vunpack.c.l.b16 %v619
    %v660 = vunpack.c.l.b16 %v620
    %v661 = vunpack.c.l.b16 %v621
    %v662 = vunpack.c.l.b16 %v622
    %v663 = vunpack.c.l.b16 %v623
    %v664 = vunpack.c.l.b16 %v624
    %v665 = vpack.c.b16 %v650, %v649
    %v666 = vpack.c.b16 %v652, %v651
    %v667 = vpack.c.b16 %v654, %v653
    %v668 = vpack.c.b16 %v656, %v655
    %v669 = vpack.c.b16 %v658, %v657
    %v670 = vpack.c.b16 %v660, %v659
    %v671 = vpack.c.b16 %v662, %v661
    %v672 = vpack.c.b16 %v664, %v663
    %681 = vmatprep.subr.bf16.mxu0 0
    %682 = vmatpush1.bf16.msra.mxu0 %v665
    %683 = vmatprep.subr.bf16.mxu0 0
    %684 = vmatpush1.bf16.msra.mxu0 %v666
    %685 = vmatprep.subr.bf16.mxu0 0
    %686 = vmatpush1.bf16.msra.mxu0 %v667
    %687 = vmatprep.subr.bf16.mxu0 0
    %688 = vmatpush1.bf16.msra.mxu0 %v668
    %689 = vmatprep.subr.bf16.mxu0 0
    %690 = vmatpush1.bf16.msra.mxu0 %v669
    %691 = vmatprep.subr.bf16.mxu0 0
    %692 = vmatpush1.bf16.msra.mxu0 %v670
    %693 = vmatprep.subr.bf16.mxu0 0
    %694 = vmatpush1.bf16.msra.mxu0 %v671
    %695 = vmatprep.subr.bf16.mxu0 0
    %696 = vmatpush1.bf16.msra.mxu0 %v672
    %697 = vmatprep.subr.bf16.mxu0 0
    %698 = vmatpush1.bf16.msra.mxu0 0
    %699 = vmatprep.subr.bf16.mxu0 0
    %700 = vmatpush1.bf16.msra.mxu0 0
    %701 = vmatprep.subr.bf16.mxu0 0
    %702 = vmatpush1.bf16.msra.mxu0 0
    %703 = vmatprep.subr.bf16.mxu0 0
    %704 = vmatpush1.bf16.msra.mxu0 0
    %705 = vmatprep.subr.bf16.mxu0 0
    %706 = vmatpush1.bf16.msra.mxu0 0
    %707 = vmatprep.subr.bf16.mxu0 0
    %708 = vmatpush1.bf16.msra.mxu0 0
    %709 = vmatprep.subr.bf16.mxu0 0
    %710 = vmatpush1.bf16.msra.mxu0 0
    %711 = vmatprep.subr.bf16.mxu0 0
    %712 = vmatpush1.bf16.msra.mxu0 0
    %713 = vmatprep.mubr.bf16.mxu0 0
    %714 = vmatmul.mubr.bf16.gmra.mrb[0].mxu0 %v592
    %v715 = vpop.f32.mrb[0].mxu0
    %v716 = vadd.f32 %v631, %v715
    %v717 = vpop.f32.mrb[0].mxu0
    %v718 = vpop.f32.mrb[0].mxu0
    %v719 = vadd.f32 %v631, %v718
    %v720 = vpop.f32.mrb[0].mxu0
    %721 = vmatprep.mubr.bf16.mxu0 0
    %722 = vmatmul.mubr.bf16.gmra.mrb[0].mxu0 %v593
    %v723 = vpop.f32.mrb[0].mxu0
    %v724 = vadd.f32 %v631, %v723
    %v725 = vpop.f32.mrb[0].mxu0
    %v726 = vpop.f32.mrb[0].mxu0
    %v727 = vadd.f32 %v631, %v726
    %v728 = vpop.f32.mrb[0].mxu0
    %729 = vmatprep.mubr.bf16.mxu0 0
    %730 = vmatmul.mubr.bf16.gmra.mrb[0].mxu0 %v594
    %v731 = vpop.f32.mrb[0].mxu0
    %v732 = vadd.f32 %v631, %v731
    %v733 = vpop.f32.mrb[0].mxu0
    %v734 = vpop.f32.mrb[0].mxu0
    %v735 = vadd.f32 %v631, %v734
    %v736 = vpop.f32.mrb[0].mxu0
    %737 = vmatprep.mubr.bf16.mxu0 0
    %738 = vmatmul.mubr.bf16.gmra.mrb[0].mxu0 %v595
    %v739 = vpop.f32.mrb[0].mxu0
    %v740 = vadd.f32 %v631, %v739
    %v741 = vpop.f32.mrb[0].mxu0
    %v742 = vpop.f32.mrb[0].mxu0
    %v743 = vadd.f32 %v631, %v742
    %v744 = vpop.f32.mrb[0].mxu0
    %745 = vmatprep.mubr.bf16.mxu0 0
    %746 = vmatmul.mubr.bf16.gmra.mrb[0].mxu0 %v596
    %v747 = vpop.f32.mrb[0].mxu0
    %v748 = vadd.f32 %v631, %v747
    %v749 = vpop.f32.mrb[0].mxu0
    %v750 = vpop.f32.mrb[0].mxu0
    %v751 = vadd.f32 %v631, %v750
    %v752 = vpop.f32.mrb[0].mxu0
    %753 = vmatprep.mubr.bf16.mxu0 0
    %754 = vmatmul.mubr.bf16.gmra.mrb[0].mxu0 %v597
    %v755 = vpop.f32.mrb[0].mxu0
    %v756 = vadd.f32 %v631, %v755
    %v757 = vpop.f32.mrb[0].mxu0
    %v758 = vpop.f32.mrb[0].mxu0
    %v759 = vadd.f32 %v631, %v758
    %v760 = vpop.f32.mrb[0].mxu0
    %761 = vmatprep.mubr.bf16.mxu0 0
    %762 = vmatmul.mubr.bf16.gmra.mrb[0].mxu0 %v598
    %v763 = vpop.f32.mrb[0].mxu0
    %v764 = vadd.f32 %v631, %v763
    %v765 = vpop.f32.mrb[0].mxu0
    %v766 = vpop.f32.mrb[0].mxu0
    %v767 = vadd.f32 %v631, %v766
    %v768 = vpop.f32.mrb[0].mxu0
    %769 = vmatprep.mubr.bf16.mxu0 0
    %770 = vmatmul.mubr.bf16.gmra.mrb[0].mxu0 %v599
    %v771 = vpop.f32.mrb[0].mxu0
    %v772 = vadd.f32 %v631, %v771
    %v773 = vpop.f32.mrb[0].mxu0
    %v774 = vpop.f32.mrb[0].mxu0
    %v775 = vadd.f32 %v631, %v774
    %v776 = vpop.f32.mrb[0].mxu0
    %777 = vmatprep.mubr.bf16.mxu0 0
    %778 = vmatmul.mubr.bf16.gmra.mrb[0].mxu0 %v600
    %v779 = vpop.f32.mrb[0].mxu0
    %v780 = vadd.f32 %v631, %v779
    %v781 = vpop.f32.mrb[0].mxu0
    %v782 = vpop.f32.mrb[0].mxu0
    %v783 = vadd.f32 %v631, %v782
    %v784 = vpop.f32.mrb[0].mxu0
    %785 = vmatprep.mubr.bf16.mxu0 0
    %786 = vmatmul.mubr.bf16.gmra.mrb[0].mxu0 %v601
    %v787 = vpop.f32.mrb[0].mxu0
    %v788 = vadd.f32 %v631, %v787
    %v789 = vpop.f32.mrb[0].mxu0
    %v790 = vpop.f32.mrb[0].mxu0
    %v791 = vadd.f32 %v631, %v790
    %v792 = vpop.f32.mrb[0].mxu0
    %793 = vmatprep.mubr.bf16.mxu0 0
    %794 = vmatmul.mubr.bf16.gmra.mrb[0].mxu0 %v602
    %v795 = vpop.f32.mrb[0].mxu0
    %v796 = vadd.f32 %v631, %v795
    %v797 = vpop.f32.mrb[0].mxu0
    %v798 = vpop.f32.mrb[0].mxu0
    %v799 = vadd.f32 %v631, %v798
    %v800 = vpop.f32.mrb[0].mxu0
    %801 = vmatprep.mubr.bf16.mxu0 0
    %802 = vmatmul.mubr.bf16.gmra.mrb[0].mxu0 %v603
    %v803 = vpop.f32.mrb[0].mxu0
    %v804 = vadd.f32 %v631, %v803
    %v805 = vpop.f32.mrb[0].mxu0
    %v806 = vpop.f32.mrb[0].mxu0
    %v807 = vadd.f32 %v631, %v806
    %v808 = vpop.f32.mrb[0].mxu0
    %809 = vmatprep.mubr.bf16.mxu0 0
    %810 = vmatmul.mubr.bf16.gmra.mrb[0].mxu0 %v604
    %v811 = vpop.f32.mrb[0].mxu0
    %v812 = vadd.f32 %v631, %v811
    %v813 = vpop.f32.mrb[0].mxu0
    %v814 = vpop.f32.mrb[0].mxu0
    %v815 = vadd.f32 %v631, %v814
    %v816 = vpop.f32.mrb[0].mxu0
    %817 = vmatprep.mubr.bf16.mxu0 0
    %818 = vmatmul.mubr.bf16.gmra.mrb[0].mxu0 %v605
    %v819 = vpop.f32.mrb[0].mxu0
    %v820 = vadd.f32 %v631, %v819
    %v821 = vpop.f32.mrb[0].mxu0
    %v822 = vpop.f32.mrb[0].mxu0
    %v823 = vadd.f32 %v631, %v822
    %v824 = vpop.f32.mrb[0].mxu0
    %825 = vmatprep.mubr.bf16.mxu0 0
    %826 = vmatmul.mubr.bf16.gmra.mrb[0].mxu0 %v606
    %v827 = vpop.f32.mrb[0].mxu0
    %v828 = vadd.f32 %v631, %v827
    %v829 = vpop.f32.mrb[0].mxu0
    %v830 = vpop.f32.mrb[0].mxu0
    %v831 = vadd.f32 %v631, %v830
    %v832 = vpop.f32.mrb[0].mxu0
    %833 = vmatprep.mubr.bf16.mxu0 0
    %834 = vmatmul.mubr.bf16.gmra.mrb[0].mxu0 %v607
    %v835 = vpop.f32.mrb[0].mxu0
    %v836 = vadd.f32 %v631, %v835
    %v837 = vpop.f32.mrb[0].mxu0
    %v838 = vpop.f32.mrb[0].mxu0
    %v839 = vadd.f32 %v631, %v838
    %v840 = vpop.f32.mrb[0].mxu0
    %841 = vdwg.mxu0
    %v842 = vmax.f32 %v716, 0.0
    %v843 = vmax.f32 %v719, 0.0
    %v844 = vmax.f32 %v724, 0.0
    %v845 = vmax.f32 %v727, 0.0
    %v846 = vmax.f32 %v732, 0.0
    %v847 = vmax.f32 %v735, 0.0
    %v848 = vmax.f32 %v740, 0.0
    %v849 = vmax.f32 %v743, 0.0
    %v850 = vmax.f32 %v748, 0.0
    %v851 = vmax.f32 %v751, 0.0
    %v852 = vmax.f32 %v756, 0.0
    %v853 = vmax.f32 %v759, 0.0
    %v854 = vmax.f32 %v764, 0.0
    %v855 = vmax.f32 %v767, 0.0
    %v856 = vmax.f32 %v772, 0.0
    %v857 = vmax.f32 %v775, 0.0
    %v858 = vmax.f32 %v780, 0.0
    %v859 = vmax.f32 %v783, 0.0
    %v860 = vmax.f32 %v788, 0.0
    %v861 = vmax.f32 %v791, 0.0
    %v862 = vmax.f32 %v796, 0.0
    %v863 = vmax.f32 %v799, 0.0
    %v864 = vmax.f32 %v804, 0.0
    %v865 = vmax.f32 %v807, 0.0
    %v866 = vmax.f32 %v812, 0.0
    %v867 = vmax.f32 %v815, 0.0
    %v868 = vmax.f32 %v820, 0.0
    %v869 = vmax.f32 %v823, 0.0
    %v870 = vmax.f32 %v828, 0.0
    %v871 = vmax.f32 %v831, 0.0
    %v872 = vmax.f32 %v836, 0.0
    %v873 = vmax.f32 %v839, 0.0
    %v874 = vpack.c.bf16 %v843, %v842
    %v875 = vpack.c.bf16 %v845, %v844
    %v876 = vpack.c.bf16 %v847, %v846
    %v877 = vpack.c.bf16 %v849, %v848
    %v878 = vpack.c.bf16 %v851, %v850
    %v879 = vpack.c.bf16 %v853, %v852
    %v880 = vpack.c.bf16 %v855, %v854
    %v881 = vpack.c.bf16 %v857, %v856
    %v882 = vpack.c.bf16 %v859, %v858
    %v883 = vpack.c.bf16 %v861, %v860
    %v884 = vpack.c.bf16 %v863, %v862
    %v885 = vpack.c.bf16 %v865, %v864
    %v886 = vpack.c.bf16 %v867, %v866
    %v887 = vpack.c.bf16 %v869, %v868
    %v888 = vpack.c.bf16 %v871, %v870
    %v889 = vpack.c.bf16 %v873, %v872
    %s890 = scalar_lea.vmem [#allocation2], 192
    %v891 = vld [vmem:[%s890] sm:$0xf]
    %v892 = vld [vmem:[%s890 + $0x4] sm:$0xf]
    %v893 = vld [vmem:[%s890 + $0x8] sm:$0xf]
    %v894 = vld [vmem:[%s890 + $0xc] sm:$0xf]
    %v895 = vld [vmem:[%s890 + $0x10] sm:$0xf]
    %v896 = vld [vmem:[%s890 + $0x14] sm:$0xf]
    %v897 = vld [vmem:[%s890 + $0x18] sm:$0xf]
    %v898 = vld [vmem:[%s890 + $0x1c] sm:$0xf]
    %v899 = vld [vmem:[%s890 + $0x20] sm:$0xf]
    %v900 = vld [vmem:[%s890 + $0x24] sm:$0xf]
    %v901 = vld [vmem:[%s890 + $0x28] sm:$0xf]
    %v902 = vld [vmem:[%s890 + $0x2c] sm:$0xf]
    %v903 = vld [vmem:[%s890 + $0x30] sm:$0xf]
    %v904 = vld [vmem:[%s890 + $0x34] sm:$0xf]
    %v905 = vld [vmem:[%s890 + $0x38] sm:$0xf]
    %v906 = vld [vmem:[%s890 + $0x3c] sm:$0xf]
    %s907 = scalar_lea.vmem %s2, 3
    %v908 = vld [vmem:[%s907] sm:$0x1]
    %v910 = vlaneseq
    %v911 = vshrl.u32 %v910, 7
    %v912 = vsub.s32 0, %v911
    %v913 = vrot.slane %v908, %v912
    %v931 = vunpack.c.l.b16 %v891
    %v932 = vunpack.c.l.b16 %v892
    %v933 = vunpack.c.l.b16 %v893
    %v934 = vunpack.c.l.b16 %v894
    %v935 = vunpack.c.l.b16 %v895
    %v936 = vunpack.c.l.b16 %v896
    %v937 = vunpack.c.l.b16 %v897
    %v938 = vunpack.c.l.b16 %v898
    %v939 = vunpack.c.l.b16 %v899
    %v940 = vunpack.c.l.b16 %v900
    %v941 = vunpack.c.l.b16 %v901
    %v942 = vunpack.c.l.b16 %v902
    %v943 = vunpack.c.l.b16 %v903
    %v944 = vunpack.c.l.b16 %v904
    %v945 = vunpack.c.l.b16 %v905
    %v946 = vunpack.c.l.b16 %v906
    %v947 = vpack.c.b16 %v932, %v931
    %v948 = vpack.c.b16 %v934, %v933
    %v949 = vpack.c.b16 %v936, %v935
    %v950 = vpack.c.b16 %v938, %v937
    %v951 = vpack.c.b16 %v940, %v939
    %v952 = vpack.c.b16 %v942, %v941
    %v953 = vpack.c.b16 %v944, %v943
    %v954 = vpack.c.b16 %v946, %v945
    %963 = vmatprep.subr.bf16.mxu0 0
    %964 = vmatpush1.bf16.msra.mxu0 %v947
    %965 = vmatprep.subr.bf16.mxu0 0
    %966 = vmatpush1.bf16.msra.mxu0 %v948
    %967 = vmatprep.subr.bf16.mxu0 0
    %968 = vmatpush1.bf16.msra.mxu0 %v949
    %969 = vmatprep.subr.bf16.mxu0 0
    %970 = vmatpush1.bf16.msra.mxu0 %v950
    %971 = vmatprep.subr.bf16.mxu0 0
    %972 = vmatpush1.bf16.msra.mxu0 %v951
    %973 = vmatprep.subr.bf16.mxu0 0
    %974 = vmatpush1.bf16.msra.mxu0 %v952
    %975 = vmatprep.subr.bf16.mxu0 0
    %976 = vmatpush1.bf16.msra.mxu0 %v953
    %977 = vmatprep.subr.bf16.mxu0 0
    %978 = vmatpush1.bf16.msra.mxu0 %v954
    %979 = vmatprep.subr.bf16.mxu0 0
    %980 = vmatpush1.bf16.msra.mxu0 0
    %981 = vmatprep.subr.bf16.mxu0 0
    %982 = vmatpush1.bf16.msra.mxu0 0
    %983 = vmatprep.subr.bf16.mxu0 0
    %984 = vmatpush1.bf16.msra.mxu0 0
    %985 = vmatprep.subr.bf16.mxu0 0
    %986 = vmatpush1.bf16.msra.mxu0 0
    %987 = vmatprep.subr.bf16.mxu0 0
    %988 = vmatpush1.bf16.msra.mxu0 0
    %989 = vmatprep.subr.bf16.mxu0 0
    %990 = vmatpush1.bf16.msra.mxu0 0
    %991 = vmatprep.subr.bf16.mxu0 0
    %992 = vmatpush1.bf16.msra.mxu0 0
    %993 = vmatprep.subr.bf16.mxu0 0
    %994 = vmatpush1.bf16.msra.mxu0 0
    %995 = vmatprep.mubr.bf16.mxu0 0
    %996 = vmatmul.mubr.bf16.gmra.mrb[0].mxu0 %v874
    %v997 = vpop.f32.mrb[0].mxu0
    %v998 = vadd.f32 %v913, %v997
    %v999 = vpop.f32.mrb[0].mxu0
    %v1000 = vpop.f32.mrb[0].mxu0
    %v1001 = vadd.f32 %v913, %v1000
    %v1002 = vpop.f32.mrb[0].mxu0
    %1003 = vmatprep.mubr.bf16.mxu0 0
    %1004 = vmatmul.mubr.bf16.gmra.mrb[0].mxu0 %v875
    %v1005 = vpop.f32.mrb[0].mxu0
    %v1006 = vadd.f32 %v913, %v1005
    %v1007 = vpop.f32.mrb[0].mxu0
    %v1008 = vpop.f32.mrb[0].mxu0
    %v1009 = vadd.f32 %v913, %v1008
    %v1010 = vpop.f32.mrb[0].mxu0
    %1011 = vmatprep.mubr.bf16.mxu0 0
    %1012 = vmatmul.mubr.bf16.gmra.mrb[0].mxu0 %v876
    %v1013 = vpop.f32.mrb[0].mxu0
    %v1014 = vadd.f32 %v913, %v1013
    %v1015 = vpop.f32.mrb[0].mxu0
    %v1016 = vpop.f32.mrb[0].mxu0
    %v1017 = vadd.f32 %v913, %v1016
    %v1018 = vpop.f32.mrb[0].mxu0
    %1019 = vmatprep.mubr.bf16.mxu0 0
    %1020 = vmatmul.mubr.bf16.gmra.mrb[0].mxu0 %v877
    %v1021 = vpop.f32.mrb[0].mxu0
    %v1022 = vadd.f32 %v913, %v1021
    %v1023 = vpop.f32.mrb[0].mxu0
    %v1024 = vpop.f32.mrb[0].mxu0
    %v1025 = vadd.f32 %v913, %v1024
    %v1026 = vpop.f32.mrb[0].mxu0
    %1027 = vmatprep.mubr.bf16.mxu0 0
    %1028 = vmatmul.mubr.bf16.gmra.mrb[0].mxu0 %v878
    %v1029 = vpop.f32.mrb[0].mxu0
    %v1030 = vadd.f32 %v913, %v1029
    %v1031 = vpop.f32.mrb[0].mxu0
    %v1032 = vpop.f32.mrb[0].mxu0
    %v1033 = vadd.f32 %v913, %v1032
    %v1034 = vpop.f32.mrb[0].mxu0
    %1035 = vmatprep.mubr.bf16.mxu0 0
    %1036 = vmatmul.mubr.bf16.gmra.mrb[0].mxu0 %v879
    %v1037 = vpop.f32.mrb[0].mxu0
    %v1038 = vadd.f32 %v913, %v1037
    %v1039 = vpop.f32.mrb[0].mxu0
    %v1040 = vpop.f32.mrb[0].mxu0
    %v1041 = vadd.f32 %v913, %v1040
    %v1042 = vpop.f32.mrb[0].mxu0
    %1043 = vmatprep.mubr.bf16.mxu0 0
    %1044 = vmatmul.mubr.bf16.gmra.mrb[0].mxu0 %v880
    %v1045 = vpop.f32.mrb[0].mxu0
    %v1046 = vadd.f32 %v913, %v1045
    %v1047 = vpop.f32.mrb[0].mxu0
    %v1048 = vpop.f32.mrb[0].mxu0
    %v1049 = vadd.f32 %v913, %v1048
    %v1050 = vpop.f32.mrb[0].mxu0
    %1051 = vmatprep.mubr.bf16.mxu0 0
    %1052 = vmatmul.mubr.bf16.gmra.mrb[0].mxu0 %v881
    %v1053 = vpop.f32.mrb[0].mxu0
    %v1054 = vadd.f32 %v913, %v1053
    %v1055 = vpop.f32.mrb[0].mxu0
    %v1056 = vpop.f32.mrb[0].mxu0
    %v1057 = vadd.f32 %v913, %v1056
    %v1058 = vpop.f32.mrb[0].mxu0
    %1059 = vmatprep.mubr.bf16.mxu0 0
    %1060 = vmatmul.mubr.bf16.gmra.mrb[0].mxu0 %v882
    %v1061 = vpop.f32.mrb[0].mxu0
    %v1062 = vadd.f32 %v913, %v1061
    %v1063 = vpop.f32.mrb[0].mxu0
    %v1064 = vpop.f32.mrb[0].mxu0
    %v1065 = vadd.f32 %v913, %v1064
    %v1066 = vpop.f32.mrb[0].mxu0
    %1067 = vmatprep.mubr.bf16.mxu0 0
    %1068 = vmatmul.mubr.bf16.gmra.mrb[0].mxu0 %v883
    %v1069 = vpop.f32.mrb[0].mxu0
    %v1070 = vadd.f32 %v913, %v1069
    %v1071 = vpop.f32.mrb[0].mxu0
    %v1072 = vpop.f32.mrb[0].mxu0
    %v1073 = vadd.f32 %v913, %v1072
    %v1074 = vpop.f32.mrb[0].mxu0
    %1075 = vmatprep.mubr.bf16.mxu0 0
    %1076 = vmatmul.mubr.bf16.gmra.mrb[0].mxu0 %v884
    %v1077 = vpop.f32.mrb[0].mxu0
    %v1078 = vadd.f32 %v913, %v1077
    %v1079 = vpop.f32.mrb[0].mxu0
    %v1080 = vpop.f32.mrb[0].mxu0
    %v1081 = vadd.f32 %v913, %v1080
    %v1082 = vpop.f32.mrb[0].mxu0
    %1083 = vmatprep.mubr.bf16.mxu0 0
    %1084 = vmatmul.mubr.bf16.gmra.mrb[0].mxu0 %v885
    %v1085 = vpop.f32.mrb[0].mxu0
    %v1086 = vadd.f32 %v913, %v1085
    %v1087 = vpop.f32.mrb[0].mxu0
    %v1088 = vpop.f32.mrb[0].mxu0
    %v1089 = vadd.f32 %v913, %v1088
    %v1090 = vpop.f32.mrb[0].mxu0
    %1091 = vmatprep.mubr.bf16.mxu0 0
    %1092 = vmatmul.mubr.bf16.gmra.mrb[0].mxu0 %v886
    %v1093 = vpop.f32.mrb[0].mxu0
    %v1094 = vadd.f32 %v913, %v1093
    %v1095 = vpop.f32.mrb[0].mxu0
    %v1096 = vpop.f32.mrb[0].mxu0
    %v1097 = vadd.f32 %v913, %v1096
    %v1098 = vpop.f32.mrb[0].mxu0
    %1099 = vmatprep.mubr.bf16.mxu0 0
    %1100 = vmatmul.mubr.bf16.gmra.mrb[0].mxu0 %v887
    %v1101 = vpop.f32.mrb[0].mxu0
    %v1102 = vadd.f32 %v913, %v1101
    %v1103 = vpop.f32.mrb[0].mxu0
    %v1104 = vpop.f32.mrb[0].mxu0
    %v1105 = vadd.f32 %v913, %v1104
    %v1106 = vpop.f32.mrb[0].mxu0
    %1107 = vmatprep.mubr.bf16.mxu0 0
    %1108 = vmatmul.mubr.bf16.gmra.mrb[0].mxu0 %v888
    %v1109 = vpop.f32.mrb[0].mxu0
    %v1110 = vadd.f32 %v913, %v1109
    %v1111 = vpop.f32.mrb[0].mxu0
    %v1112 = vpop.f32.mrb[0].mxu0
    %v1113 = vadd.f32 %v913, %v1112
    %v1114 = vpop.f32.mrb[0].mxu0
    %1115 = vmatprep.mubr.bf16.mxu0 0
    %1116 = vmatmul.mubr.bf16.gmra.mrb[0].mxu0 %v889
    %v1117 = vpop.f32.mrb[0].mxu0
    %v1118 = vadd.f32 %v913, %v1117
    %v1119 = vpop.f32.mrb[0].mxu0
    %v1120 = vpop.f32.mrb[0].mxu0
    %v1121 = vadd.f32 %v913, %v1120
    %v1122 = vpop.f32.mrb[0].mxu0
    %1123 = vdwg.mxu0
    %v1124 = vmax.f32 %v998, 0.0
    %v1125 = vmax.f32 %v1001, 0.0
    %v1126 = vmax.f32 %v1006, 0.0
    %v1127 = vmax.f32 %v1009, 0.0
    %v1128 = vmax.f32 %v1014, 0.0
    %v1129 = vmax.f32 %v1017, 0.0
    %v1130 = vmax.f32 %v1022, 0.0
    %v1131 = vmax.f32 %v1025, 0.0
    %v1132 = vmax.f32 %v1030, 0.0
    %v1133 = vmax.f32 %v1033, 0.0
    %v1134 = vmax.f32 %v1038, 0.0
    %v1135 = vmax.f32 %v1041, 0.0
    %v1136 = vmax.f32 %v1046, 0.0
    %v1137 = vmax.f32 %v1049, 0.0
    %v1138 = vmax.f32 %v1054, 0.0
    %v1139 = vmax.f32 %v1057, 0.0
    %v1140 = vmax.f32 %v1062, 0.0
    %v1141 = vmax.f32 %v1065, 0.0
    %v1142 = vmax.f32 %v1070, 0.0
    %v1143 = vmax.f32 %v1073, 0.0
    %v1144 = vmax.f32 %v1078, 0.0
    %v1145 = vmax.f32 %v1081, 0.0
    %v1146 = vmax.f32 %v1086, 0.0
    %v1147 = vmax.f32 %v1089, 0.0
    %v1148 = vmax.f32 %v1094, 0.0
    %v1149 = vmax.f32 %v1097, 0.0
    %v1150 = vmax.f32 %v1102, 0.0
    %v1151 = vmax.f32 %v1105, 0.0
    %v1152 = vmax.f32 %v1110, 0.0
    %v1153 = vmax.f32 %v1113, 0.0
    %v1154 = vmax.f32 %v1118, 0.0
    %v1155 = vmax.f32 %v1121, 0.0
    %v1156 = vpack.c.bf16 %v1125, %v1124
    %v1157 = vpack.c.bf16 %v1127, %v1126
    %v1158 = vpack.c.bf16 %v1129, %v1128
    %v1159 = vpack.c.bf16 %v1131, %v1130
    %v1160 = vpack.c.bf16 %v1133, %v1132
    %v1161 = vpack.c.bf16 %v1135, %v1134
    %v1162 = vpack.c.bf16 %v1137, %v1136
    %v1163 = vpack.c.bf16 %v1139, %v1138
    %v1164 = vpack.c.bf16 %v1141, %v1140
    %v1165 = vpack.c.bf16 %v1143, %v1142
    %v1166 = vpack.c.bf16 %v1145, %v1144
    %v1167 = vpack.c.bf16 %v1147, %v1146
    %v1168 = vpack.c.bf16 %v1149, %v1148
    %v1169 = vpack.c.bf16 %v1151, %v1150
    %v1170 = vpack.c.bf16 %v1153, %v1152
    %v1171 = vpack.c.bf16 %v1155, %v1154
    %s1172 = scalar_lea.vmem [#allocation2], 256
    %v1173 = vld [vmem:[%s1172] sm:$0xf]
    %v1174 = vld [vmem:[%s1172 + $0x4] sm:$0xf]
    %v1175 = vld [vmem:[%s1172 + $0x8] sm:$0xf]
    %v1176 = vld [vmem:[%s1172 + $0xc] sm:$0xf]
    %v1177 = vld [vmem:[%s1172 + $0x10] sm:$0xf]
    %v1178 = vld [vmem:[%s1172 + $0x14] sm:$0xf]
    %v1179 = vld [vmem:[%s1172 + $0x18] sm:$0xf]
    %v1180 = vld [vmem:[%s1172 + $0x1c] sm:$0xf]
    %v1181 = vld [vmem:[%s1172 + $0x20] sm:$0xf]
    %v1182 = vld [vmem:[%s1172 + $0x24] sm:$0xf]
    %v1183 = vld [vmem:[%s1172 + $0x28] sm:$0xf]
    %v1184 = vld [vmem:[%s1172 + $0x2c] sm:$0xf]
    %v1185 = vld [vmem:[%s1172 + $0x30] sm:$0xf]
    %v1186 = vld [vmem:[%s1172 + $0x34] sm:$0xf]
    %v1187 = vld [vmem:[%s1172 + $0x38] sm:$0xf]
    %v1188 = vld [vmem:[%s1172 + $0x3c] sm:$0xf]
    %s1189 = scalar_lea.vmem %s2, 4
    %v1190 = vld [vmem:[%s1189] sm:$0x1]
    %v1192 = vlaneseq
    %v1193 = vshrl.u32 %v1192, 7
    %v1194 = vsub.s32 0, %v1193
    %v1195 = vrot.slane %v1190, %v1194
    %v1213 = vunpack.c.l.b16 %v1173
    %v1214 = vunpack.c.l.b16 %v1174
    %v1215 = vunpack.c.l.b16 %v1175
    %v1216 = vunpack.c.l.b16 %v1176
    %v1217 = vunpack.c.l.b16 %v1177
    %v1218 = vunpack.c.l.b16 %v1178
    %v1219 = vunpack.c.l.b16 %v1179
    %v1220 = vunpack.c.l.b16 %v1180
    %v1221 = vunpack.c.l.b16 %v1181
    %v1222 = vunpack.c.l.b16 %v1182
    %v1223 = vunpack.c.l.b16 %v1183
    %v1224 = vunpack.c.l.b16 %v1184
    %v1225 = vunpack.c.l.b16 %v1185
    %v1226 = vunpack.c.l.b16 %v1186
    %v1227 = vunpack.c.l.b16 %v1187
    %v1228 = vunpack.c.l.b16 %v1188
    %v1229 = vpack.c.b16 %v1214, %v1213
    %v1230 = vpack.c.b16 %v1216, %v1215
    %v1231 = vpack.c.b16 %v1218, %v1217
    %v1232 = vpack.c.b16 %v1220, %v1219
    %v1233 = vpack.c.b16 %v1222, %v1221
    %v1234 = vpack.c.b16 %v1224, %v1223
    %v1235 = vpack.c.b16 %v1226, %v1225
    %v1236 = vpack.c.b16 %v1228, %v1227
    %1245 = vmatprep.subr.bf16.mxu0 0
    %1246 = vmatpush1.bf16.msra.mxu0 %v1229
    %1247 = vmatprep.subr.bf16.mxu0 0
    %1248 = vmatpush1.bf16.msra.mxu0 %v1230
    %1249 = vmatprep.subr.bf16.mxu0 0
    %1250 = vmatpush1.bf16.msra.mxu0 %v1231
    %1251 = vmatprep.subr.bf16.mxu0 0
    %1252 = vmatpush1.bf16.msra.mxu0 %v1232
    %1253 = vmatprep.subr.bf16.mxu0 0
    %1254 = vmatpush1.bf16.msra.mxu0 %v1233
    %1255 = vmatprep.subr.bf16.mxu0 0
    %1256 = vmatpush1.bf16.msra.mxu0 %v1234
    %1257 = vmatprep.subr.bf16.mxu0 0
    %1258 = vmatpush1.bf16.msra.mxu0 %v1235
    %1259 = vmatprep.subr.bf16.mxu0 0
    %1260 = vmatpush1.bf16.msra.mxu0 %v1236
    %1261 = vmatprep.subr.bf16.mxu0 0
    %1262 = vmatpush1.bf16.msra.mxu0 0
    %1263 = vmatprep.subr.bf16.mxu0 0
    %1264 = vmatpush1.bf16.msra.mxu0 0
    %1265 = vmatprep.subr.bf16.mxu0 0
    %1266 = vmatpush1.bf16.msra.mxu0 0
    %1267 = vmatprep.subr.bf16.mxu0 0
    %1268 = vmatpush1.bf16.msra.mxu0 0
    %1269 = vmatprep.subr.bf16.mxu0 0
    %1270 = vmatpush1.bf16.msra.mxu0 0
    %1271 = vmatprep.subr.bf16.mxu0 0
    %1272 = vmatpush1.bf16.msra.mxu0 0
    %1273 = vmatprep.subr.bf16.mxu0 0
    %1274 = vmatpush1.bf16.msra.mxu0 0
    %1275 = vmatprep.subr.bf16.mxu0 0
    %1276 = vmatpush1.bf16.msra.mxu0 0
    %1277 = vmatprep.mubr.bf16.mxu0 0
    %1278 = vmatmul.mubr.bf16.gmra.mrb[0].mxu0 %v1156
    %v1279 = vpop.f32.mrb[0].mxu0
    %v1280 = vadd.f32 %v1195, %v1279
    %v1281 = vpop.f32.mrb[0].mxu0
    %v1282 = vpop.f32.mrb[0].mxu0
    %v1283 = vadd.f32 %v1195, %v1282
    %v1284 = vpop.f32.mrb[0].mxu0
    %1285 = vmatprep.mubr.bf16.mxu0 0
    %1286 = vmatmul.mubr.bf16.gmra.mrb[0].mxu0 %v1157
    %v1287 = vpop.f32.mrb[0].mxu0
    %v1288 = vadd.f32 %v1195, %v1287
    %v1289 = vpop.f32.mrb[0].mxu0
    %v1290 = vpop.f32.mrb[0].mxu0
    %v1291 = vadd.f32 %v1195, %v1290
    %v1292 = vpop.f32.mrb[0].mxu0
    %1293 = vmatprep.mubr.bf16.mxu0 0
    %1294 = vmatmul.mubr.bf16.gmra.mrb[0].mxu0 %v1158
    %v1295 = vpop.f32.mrb[0].mxu0
    %v1296 = vadd.f32 %v1195, %v1295
    %v1297 = vpop.f32.mrb[0].mxu0
    %v1298 = vpop.f32.mrb[0].mxu0
    %v1299 = vadd.f32 %v1195, %v1298
    %v1300 = vpop.f32.mrb[0].mxu0
    %1301 = vmatprep.mubr.bf16.mxu0 0
    %1302 = vmatmul.mubr.bf16.gmra.mrb[0].mxu0 %v1159
    %v1303 = vpop.f32.mrb[0].mxu0
    %v1304 = vadd.f32 %v1195, %v1303
    %v1305 = vpop.f32.mrb[0].mxu0
    %v1306 = vpop.f32.mrb[0].mxu0
    %v1307 = vadd.f32 %v1195, %v1306
    %v1308 = vpop.f32.mrb[0].mxu0
    %1309 = vmatprep.mubr.bf16.mxu0 0
    %1310 = vmatmul.mubr.bf16.gmra.mrb[0].mxu0 %v1160
    %v1311 = vpop.f32.mrb[0].mxu0
    %v1312 = vadd.f32 %v1195, %v1311
    %v1313 = vpop.f32.mrb[0].mxu0
    %v1314 = vpop.f32.mrb[0].mxu0
    %v1315 = vadd.f32 %v1195, %v1314
    %v1316 = vpop.f32.mrb[0].mxu0
    %1317 = vmatprep.mubr.bf16.mxu0 0
    %1318 = vmatmul.mubr.bf16.gmra.mrb[0].mxu0 %v1161
    %v1319 = vpop.f32.mrb[0].mxu0
    %v1320 = vadd.f32 %v1195, %v1319
    %v1321 = vpop.f32.mrb[0].mxu0
    %v1322 = vpop.f32.mrb[0].mxu0
    %v1323 = vadd.f32 %v1195, %v1322
    %v1324 = vpop.f32.mrb[0].mxu0
    %1325 = vmatprep.mubr.bf16.mxu0 0
    %1326 = vmatmul.mubr.bf16.gmra.mrb[0].mxu0 %v1162
    %v1327 = vpop.f32.mrb[0].mxu0
    %v1328 = vadd.f32 %v1195, %v1327
    %v1329 = vpop.f32.mrb[0].mxu0
    %v1330 = vpop.f32.mrb[0].mxu0
    %v1331 = vadd.f32 %v1195, %v1330
    %v1332 = vpop.f32.mrb[0].mxu0
    %1333 = vmatprep.mubr.bf16.mxu0 0
    %1334 = vmatmul.mubr.bf16.gmra.mrb[0].mxu0 %v1163
    %v1335 = vpop.f32.mrb[0].mxu0
    %v1336 = vadd.f32 %v1195, %v1335
    %v1337 = vpop.f32.mrb[0].mxu0
    %v1338 = vpop.f32.mrb[0].mxu0
    %v1339 = vadd.f32 %v1195, %v1338
    %v1340 = vpop.f32.mrb[0].mxu0
    %1341 = vmatprep.mubr.bf16.mxu0 0
    %1342 = vmatmul.mubr.bf16.gmra.mrb[0].mxu0 %v1164
    %v1343 = vpop.f32.mrb[0].mxu0
    %v1344 = vadd.f32 %v1195, %v1343
    %v1345 = vpop.f32.mrb[0].mxu0
    %v1346 = vpop.f32.mrb[0].mxu0
    %v1347 = vadd.f32 %v1195, %v1346
    %v1348 = vpop.f32.mrb[0].mxu0
    %1349 = vmatprep.mubr.bf16.mxu0 0
    %1350 = vmatmul.mubr.bf16.gmra.mrb[0].mxu0 %v1165
    %v1351 = vpop.f32.mrb[0].mxu0
    %v1352 = vadd.f32 %v1195, %v1351
    %v1353 = vpop.f32.mrb[0].mxu0
    %v1354 = vpop.f32.mrb[0].mxu0
    %v1355 = vadd.f32 %v1195, %v1354
    %v1356 = vpop.f32.mrb[0].mxu0
    %1357 = vmatprep.mubr.bf16.mxu0 0
    %1358 = vmatmul.mubr.bf16.gmra.mrb[0].mxu0 %v1166
    %v1359 = vpop.f32.mrb[0].mxu0
    %v1360 = vadd.f32 %v1195, %v1359
    %v1361 = vpop.f32.mrb[0].mxu0
    %v1362 = vpop.f32.mrb[0].mxu0
    %v1363 = vadd.f32 %v1195, %v1362
    %v1364 = vpop.f32.mrb[0].mxu0
    %1365 = vmatprep.mubr.bf16.mxu0 0
    %1366 = vmatmul.mubr.bf16.gmra.mrb[0].mxu0 %v1167
    %v1367 = vpop.f32.mrb[0].mxu0
    %v1368 = vadd.f32 %v1195, %v1367
    %v1369 = vpop.f32.mrb[0].mxu0
    %v1370 = vpop.f32.mrb[0].mxu0
    %v1371 = vadd.f32 %v1195, %v1370
    %v1372 = vpop.f32.mrb[0].mxu0
    %1373 = vmatprep.mubr.bf16.mxu0 0
    %1374 = vmatmul.mubr.bf16.gmra.mrb[0].mxu0 %v1168
    %v1375 = vpop.f32.mrb[0].mxu0
    %v1376 = vadd.f32 %v1195, %v1375
    %v1377 = vpop.f32.mrb[0].mxu0
    %v1378 = vpop.f32.mrb[0].mxu0
    %v1379 = vadd.f32 %v1195, %v1378
    %v1380 = vpop.f32.mrb[0].mxu0
    %1381 = vmatprep.mubr.bf16.mxu0 0
    %1382 = vmatmul.mubr.bf16.gmra.mrb[0].mxu0 %v1169
    %v1383 = vpop.f32.mrb[0].mxu0
    %v1384 = vadd.f32 %v1195, %v1383
    %v1385 = vpop.f32.mrb[0].mxu0
    %v1386 = vpop.f32.mrb[0].mxu0
    %v1387 = vadd.f32 %v1195, %v1386
    %v1388 = vpop.f32.mrb[0].mxu0
    %1389 = vmatprep.mubr.bf16.mxu0 0
    %1390 = vmatmul.mubr.bf16.gmra.mrb[0].mxu0 %v1170
    %v1391 = vpop.f32.mrb[0].mxu0
    %v1392 = vadd.f32 %v1195, %v1391
    %v1393 = vpop.f32.mrb[0].mxu0
    %v1394 = vpop.f32.mrb[0].mxu0
    %v1395 = vadd.f32 %v1195, %v1394
    %v1396 = vpop.f32.mrb[0].mxu0
    %1397 = vmatprep.mubr.bf16.mxu0 0
    %1398 = vmatmul.mubr.bf16.gmra.mrb[0].mxu0 %v1171
    %v1399 = vpop.f32.mrb[0].mxu0
    %v1400 = vadd.f32 %v1195, %v1399
    %v1401 = vpop.f32.mrb[0].mxu0
    %v1402 = vpop.f32.mrb[0].mxu0
    %v1403 = vadd.f32 %v1195, %v1402
    %v1404 = vpop.f32.mrb[0].mxu0
    %1405 = vdwg.mxu0
    %v1406 = vmax.f32 %v1280, 0.0
    %v1407 = vmax.f32 %v1283, 0.0
    %v1408 = vmax.f32 %v1288, 0.0
    %v1409 = vmax.f32 %v1291, 0.0
    %v1410 = vmax.f32 %v1296, 0.0
    %v1411 = vmax.f32 %v1299, 0.0
    %v1412 = vmax.f32 %v1304, 0.0
    %v1413 = vmax.f32 %v1307, 0.0
    %v1414 = vmax.f32 %v1312, 0.0
    %v1415 = vmax.f32 %v1315, 0.0
    %v1416 = vmax.f32 %v1320, 0.0
    %v1417 = vmax.f32 %v1323, 0.0
    %v1418 = vmax.f32 %v1328, 0.0
    %v1419 = vmax.f32 %v1331, 0.0
    %v1420 = vmax.f32 %v1336, 0.0
    %v1421 = vmax.f32 %v1339, 0.0
    %v1422 = vmax.f32 %v1344, 0.0
    %v1423 = vmax.f32 %v1347, 0.0
    %v1424 = vmax.f32 %v1352, 0.0
    %v1425 = vmax.f32 %v1355, 0.0
    %v1426 = vmax.f32 %v1360, 0.0
    %v1427 = vmax.f32 %v1363, 0.0
    %v1428 = vmax.f32 %v1368, 0.0
    %v1429 = vmax.f32 %v1371, 0.0
    %v1430 = vmax.f32 %v1376, 0.0
    %v1431 = vmax.f32 %v1379, 0.0
    %v1432 = vmax.f32 %v1384, 0.0
    %v1433 = vmax.f32 %v1387, 0.0
    %v1434 = vmax.f32 %v1392, 0.0
    %v1435 = vmax.f32 %v1395, 0.0
    %v1436 = vmax.f32 %v1400, 0.0
    %v1437 = vmax.f32 %v1403, 0.0
    %v1438 = vpack.c.bf16 %v1407, %v1406
    %v1439 = vpack.c.bf16 %v1409, %v1408
    %v1440 = vpack.c.bf16 %v1411, %v1410
    %v1441 = vpack.c.bf16 %v1413, %v1412
    %v1442 = vpack.c.bf16 %v1415, %v1414
    %v1443 = vpack.c.bf16 %v1417, %v1416
    %v1444 = vpack.c.bf16 %v1419, %v1418
    %v1445 = vpack.c.bf16 %v1421, %v1420
    %v1446 = vpack.c.bf16 %v1423, %v1422
    %v1447 = vpack.c.bf16 %v1425, %v1424
    %v1448 = vpack.c.bf16 %v1427, %v1426
    %v1449 = vpack.c.bf16 %v1429, %v1428
    %v1450 = vpack.c.bf16 %v1431, %v1430
    %v1451 = vpack.c.bf16 %v1433, %v1432
    %v1452 = vpack.c.bf16 %v1435, %v1434
    %v1453 = vpack.c.bf16 %v1437, %v1436
    %s1454 = scalar_lea.vmem [#allocation2], 320
    %v1455 = vld [vmem:[%s1454] sm:$0xf]
    %v1456 = vld [vmem:[%s1454 + $0x4] sm:$0xf]
    %v1457 = vld [vmem:[%s1454 + $0x8] sm:$0xf]
    %v1458 = vld [vmem:[%s1454 + $0xc] sm:$0xf]
    %v1459 = vld [vmem:[%s1454 + $0x10] sm:$0xf]
    %v1460 = vld [vmem:[%s1454 + $0x14] sm:$0xf]
    %v1461 = vld [vmem:[%s1454 + $0x18] sm:$0xf]
    %v1462 = vld [vmem:[%s1454 + $0x1c] sm:$0xf]
    %v1463 = vld [vmem:[%s1454 + $0x20] sm:$0xf]
    %v1464 = vld [vmem:[%s1454 + $0x24] sm:$0xf]
    %v1465 = vld [vmem:[%s1454 + $0x28] sm:$0xf]
    %v1466 = vld [vmem:[%s1454 + $0x2c] sm:$0xf]
    %v1467 = vld [vmem:[%s1454 + $0x30] sm:$0xf]
    %v1468 = vld [vmem:[%s1454 + $0x34] sm:$0xf]
    %v1469 = vld [vmem:[%s1454 + $0x38] sm:$0xf]
    %v1470 = vld [vmem:[%s1454 + $0x3c] sm:$0xf]
    %s1471 = scalar_lea.vmem %s2, 5
    %v1472 = vld [vmem:[%s1471] sm:$0x1]
    %v1474 = vlaneseq
    %v1475 = vshrl.u32 %v1474, 7
    %v1476 = vsub.s32 0, %v1475
    %v1477 = vrot.slane %v1472, %v1476
    %v1495 = vunpack.c.l.b16 %v1455
    %v1496 = vunpack.c.l.b16 %v1456
    %v1497 = vunpack.c.l.b16 %v1457
    %v1498 = vunpack.c.l.b16 %v1458
    %v1499 = vunpack.c.l.b16 %v1459
    %v1500 = vunpack.c.l.b16 %v1460
    %v1501 = vunpack.c.l.b16 %v1461
    %v1502 = vunpack.c.l.b16 %v1462
    %v1503 = vunpack.c.l.b16 %v1463
    %v1504 = vunpack.c.l.b16 %v1464
    %v1505 = vunpack.c.l.b16 %v1465
    %v1506 = vunpack.c.l.b16 %v1466
    %v1507 = vunpack.c.l.b16 %v1467
    %v1508 = vunpack.c.l.b16 %v1468
    %v1509 = vunpack.c.l.b16 %v1469
    %v1510 = vunpack.c.l.b16 %v1470
    %v1511 = vpack.c.b16 %v1496, %v1495
    %v1512 = vpack.c.b16 %v1498, %v1497
    %v1513 = vpack.c.b16 %v1500, %v1499
    %v1514 = vpack.c.b16 %v1502, %v1501
    %v1515 = vpack.c.b16 %v1504, %v1503
    %v1516 = vpack.c.b16 %v1506, %v1505
    %v1517 = vpack.c.b16 %v1508, %v1507
    %v1518 = vpack.c.b16 %v1510, %v1509
    %1527 = vmatprep.subr.bf16.mxu0 0
    %1528 = vmatpush1.bf16.msra.mxu0 %v1511
    %1529 = vmatprep.subr.bf16.mxu0 0
    %1530 = vmatpush1.bf16.msra.mxu0 %v1512
    %1531 = vmatprep.subr.bf16.mxu0 0
    %1532 = vmatpush1.bf16.msra.mxu0 %v1513
    %1533 = vmatprep.subr.bf16.mxu0 0
    %1534 = vmatpush1.bf16.msra.mxu0 %v1514
    %1535 = vmatprep.subr.bf16.mxu0 0
    %1536 = vmatpush1.bf16.msra.mxu0 %v1515
    %1537 = vmatprep.subr.bf16.mxu0 0
    %1538 = vmatpush1.bf16.msra.mxu0 %v1516
    %1539 = vmatprep.subr.bf16.mxu0 0
    %1540 = vmatpush1.bf16.msra.mxu0 %v1517
    %1541 = vmatprep.subr.bf16.mxu0 0
    %1542 = vmatpush1.bf16.msra.mxu0 %v1518
    %1543 = vmatprep.subr.bf16.mxu0 0
    %1544 = vmatpush1.bf16.msra.mxu0 0
    %1545 = vmatprep.subr.bf16.mxu0 0
    %1546 = vmatpush1.bf16.msra.mxu0 0
    %1547 = vmatprep.subr.bf16.mxu0 0
    %1548 = vmatpush1.bf16.msra.mxu0 0
    %1549 = vmatprep.subr.bf16.mxu0 0
    %1550 = vmatpush1.bf16.msra.mxu0 0
    %1551 = vmatprep.subr.bf16.mxu0 0
    %1552 = vmatpush1.bf16.msra.mxu0 0
    %1553 = vmatprep.subr.bf16.mxu0 0
    %1554 = vmatpush1.bf16.msra.mxu0 0
    %1555 = vmatprep.subr.bf16.mxu0 0
    %1556 = vmatpush1.bf16.msra.mxu0 0
    %1557 = vmatprep.subr.bf16.mxu0 0
    %1558 = vmatpush1.bf16.msra.mxu0 0
    %1559 = vmatprep.mubr.bf16.mxu0 0
    %1560 = vmatmul.mubr.bf16.gmra.mrb[0].mxu0 %v1438
    %v1561 = vpop.f32.mrb[0].mxu0
    %v1562 = vadd.f32 %v1477, %v1561
    %v1563 = vpop.f32.mrb[0].mxu0
    %v1564 = vpop.f32.mrb[0].mxu0
    %v1565 = vadd.f32 %v1477, %v1564
    %v1566 = vpop.f32.mrb[0].mxu0
    %1567 = vmatprep.mubr.bf16.mxu0 0
    %1568 = vmatmul.mubr.bf16.gmra.mrb[0].mxu0 %v1439
    %v1569 = vpop.f32.mrb[0].mxu0
    %v1570 = vadd.f32 %v1477, %v1569
    %v1571 = vpop.f32.mrb[0].mxu0
    %v1572 = vpop.f32.mrb[0].mxu0
    %v1573 = vadd.f32 %v1477, %v1572
    %v1574 = vpop.f32.mrb[0].mxu0
    %1575 = vmatprep.mubr.bf16.mxu0 0
    %1576 = vmatmul.mubr.bf16.gmra.mrb[0].mxu0 %v1440
    %v1577 = vpop.f32.mrb[0].mxu0
    %v1578 = vadd.f32 %v1477, %v1577
    %v1579 = vpop.f32.mrb[0].mxu0
    %v1580 = vpop.f32.mrb[0].mxu0
    %v1581 = vadd.f32 %v1477, %v1580
    %v1582 = vpop.f32.mrb[0].mxu0
    %1583 = vmatprep.mubr.bf16.mxu0 0
    %1584 = vmatmul.mubr.bf16.gmra.mrb[0].mxu0 %v1441
    %v1585 = vpop.f32.mrb[0].mxu0
    %v1586 = vadd.f32 %v1477, %v1585
    %v1587 = vpop.f32.mrb[0].mxu0
    %v1588 = vpop.f32.mrb[0].mxu0
    %v1589 = vadd.f32 %v1477, %v1588
    %v1590 = vpop.f32.mrb[0].mxu0
    %1591 = vmatprep.mubr.bf16.mxu0 0
    %1592 = vmatmul.mubr.bf16.gmra.mrb[0].mxu0 %v1442
    %v1593 = vpop.f32.mrb[0].mxu0
    %v1594 = vadd.f32 %v1477, %v1593
    %v1595 = vpop.f32.mrb[0].mxu0
    %v1596 = vpop.f32.mrb[0].mxu0
    %v1597 = vadd.f32 %v1477, %v1596
    %v1598 = vpop.f32.mrb[0].mxu0
    %1599 = vmatprep.mubr.bf16.mxu0 0
    %1600 = vmatmul.mubr.bf16.gmra.mrb[0].mxu0 %v1443
    %v1601 = vpop.f32.mrb[0].mxu0
    %v1602 = vadd.f32 %v1477, %v1601
    %v1603 = vpop.f32.mrb[0].mxu0
    %v1604 = vpop.f32.mrb[0].mxu0
    %v1605 = vadd.f32 %v1477, %v1604
    %v1606 = vpop.f32.mrb[0].mxu0
    %1607 = vmatprep.mubr.bf16.mxu0 0
    %1608 = vmatmul.mubr.bf16.gmra.mrb[0].mxu0 %v1444
    %v1609 = vpop.f32.mrb[0].mxu0
    %v1610 = vadd.f32 %v1477, %v1609
    %v1611 = vpop.f32.mrb[0].mxu0
    %v1612 = vpop.f32.mrb[0].mxu0
    %v1613 = vadd.f32 %v1477, %v1612
    %v1614 = vpop.f32.mrb[0].mxu0
    %1615 = vmatprep.mubr.bf16.mxu0 0
    %1616 = vmatmul.mubr.bf16.gmra.mrb[0].mxu0 %v1445
    %v1617 = vpop.f32.mrb[0].mxu0
    %v1618 = vadd.f32 %v1477, %v1617
    %v1619 = vpop.f32.mrb[0].mxu0
    %v1620 = vpop.f32.mrb[0].mxu0
    %v1621 = vadd.f32 %v1477, %v1620
    %v1622 = vpop.f32.mrb[0].mxu0
    %1623 = vmatprep.mubr.bf16.mxu0 0
    %1624 = vmatmul.mubr.bf16.gmra.mrb[0].mxu0 %v1446
    %v1625 = vpop.f32.mrb[0].mxu0
    %v1626 = vadd.f32 %v1477, %v1625
    %v1627 = vpop.f32.mrb[0].mxu0
    %v1628 = vpop.f32.mrb[0].mxu0
    %v1629 = vadd.f32 %v1477, %v1628
    %v1630 = vpop.f32.mrb[0].mxu0
    %1631 = vmatprep.mubr.bf16.mxu0 0
    %1632 = vmatmul.mubr.bf16.gmra.mrb[0].mxu0 %v1447
    %v1633 = vpop.f32.mrb[0].mxu0
    %v1634 = vadd.f32 %v1477, %v1633
    %v1635 = vpop.f32.mrb[0].mxu0
    %v1636 = vpop.f32.mrb[0].mxu0
    %v1637 = vadd.f32 %v1477, %v1636
    %v1638 = vpop.f32.mrb[0].mxu0
    %1639 = vmatprep.mubr.bf16.mxu0 0
    %1640 = vmatmul.mubr.bf16.gmra.mrb[0].mxu0 %v1448
    %v1641 = vpop.f32.mrb[0].mxu0
    %v1642 = vadd.f32 %v1477, %v1641
    %v1643 = vpop.f32.mrb[0].mxu0
    %v1644 = vpop.f32.mrb[0].mxu0
    %v1645 = vadd.f32 %v1477, %v1644
    %v1646 = vpop.f32.mrb[0].mxu0
    %1647 = vmatprep.mubr.bf16.mxu0 0
    %1648 = vmatmul.mubr.bf16.gmra.mrb[0].mxu0 %v1449
    %v1649 = vpop.f32.mrb[0].mxu0
    %v1650 = vadd.f32 %v1477, %v1649
    %v1651 = vpop.f32.mrb[0].mxu0
    %v1652 = vpop.f32.mrb[0].mxu0
    %v1653 = vadd.f32 %v1477, %v1652
    %v1654 = vpop.f32.mrb[0].mxu0
    %1655 = vmatprep.mubr.bf16.mxu0 0
    %1656 = vmatmul.mubr.bf16.gmra.mrb[0].mxu0 %v1450
    %v1657 = vpop.f32.mrb[0].mxu0
    %v1658 = vadd.f32 %v1477, %v1657
    %v1659 = vpop.f32.mrb[0].mxu0
    %v1660 = vpop.f32.mrb[0].mxu0
    %v1661 = vadd.f32 %v1477, %v1660
    %v1662 = vpop.f32.mrb[0].mxu0
    %1663 = vmatprep.mubr.bf16.mxu0 0
    %1664 = vmatmul.mubr.bf16.gmra.mrb[0].mxu0 %v1451
    %v1665 = vpop.f32.mrb[0].mxu0
    %v1666 = vadd.f32 %v1477, %v1665
    %v1667 = vpop.f32.mrb[0].mxu0
    %v1668 = vpop.f32.mrb[0].mxu0
    %v1669 = vadd.f32 %v1477, %v1668
    %v1670 = vpop.f32.mrb[0].mxu0
    %1671 = vmatprep.mubr.bf16.mxu0 0
    %1672 = vmatmul.mubr.bf16.gmra.mrb[0].mxu0 %v1452
    %v1673 = vpop.f32.mrb[0].mxu0
    %v1674 = vadd.f32 %v1477, %v1673
    %v1675 = vpop.f32.mrb[0].mxu0
    %v1676 = vpop.f32.mrb[0].mxu0
    %v1677 = vadd.f32 %v1477, %v1676
    %v1678 = vpop.f32.mrb[0].mxu0
    %1679 = vmatprep.mubr.bf16.mxu0 0
    %1680 = vmatmul.mubr.bf16.gmra.mrb[0].mxu0 %v1453
    %v1681 = vpop.f32.mrb[0].mxu0
    %v1682 = vadd.f32 %v1477, %v1681
    %v1683 = vpop.f32.mrb[0].mxu0
    %v1684 = vpop.f32.mrb[0].mxu0
    %v1685 = vadd.f32 %v1477, %v1684
    %v1686 = vpop.f32.mrb[0].mxu0
    %1687 = vdwg.mxu0
    %v1688 = vlaneseq
    %v1689 = vand.u32 %v1688, 127
    %vm1690 = vcmp.lt.s32.totalorder %v1689, 16
    %v1691 = vxor.u32 %v1562, 2147483648
    %v1692 = vxor.u32 %v1565, 2147483648
    %v1693 = vxor.u32 %v1570, 2147483648
    %v1694 = vxor.u32 %v1573, 2147483648
    %v1695 = vxor.u32 %v1578, 2147483648
    %v1696 = vxor.u32 %v1581, 2147483648
    %v1697 = vxor.u32 %v1586, 2147483648
    %v1698 = vxor.u32 %v1589, 2147483648
    %v1699 = vxor.u32 %v1594, 2147483648
    %v1700 = vxor.u32 %v1597, 2147483648
    %v1701 = vxor.u32 %v1602, 2147483648
    %v1702 = vxor.u32 %v1605, 2147483648
    %v1703 = vxor.u32 %v1610, 2147483648
    %v1704 = vxor.u32 %v1613, 2147483648
    %v1705 = vxor.u32 %v1618, 2147483648
    %v1706 = vxor.u32 %v1621, 2147483648
    %v1707 = vxor.u32 %v1626, 2147483648
    %v1708 = vxor.u32 %v1629, 2147483648
    %v1709 = vxor.u32 %v1634, 2147483648
    %v1710 = vxor.u32 %v1637, 2147483648
    %v1711 = vxor.u32 %v1642, 2147483648
    %v1712 = vxor.u32 %v1645, 2147483648
    %v1713 = vxor.u32 %v1650, 2147483648
    %v1714 = vxor.u32 %v1653, 2147483648
    %v1715 = vxor.u32 %v1658, 2147483648
    %v1716 = vxor.u32 %v1661, 2147483648
    %v1717 = vxor.u32 %v1666, 2147483648
    %v1718 = vxor.u32 %v1669, 2147483648
    %v1719 = vxor.u32 %v1674, 2147483648
    %v1720 = vxor.u32 %v1677, 2147483648
    %v1721 = vxor.u32 %v1682, 2147483648
    %v1722 = vxor.u32 %v1685, 2147483648
    %v1723 = vmul.f32 %v1691, 1.442695
    %v1724 = vpow.pop %v1723
    %v1725 = vmul.f32 %v1692, 1.442695
    %v1726 = vpow.pop %v1725
    %v1727 = vmul.f32 %v1693, 1.442695
    %v1728 = vpow.pop %v1727
    %v1729 = vmul.f32 %v1694, 1.442695
    %v1730 = vpow.pop %v1729
    %v1731 = vmul.f32 %v1695, 1.442695
    %v1732 = vpow.pop %v1731
    %v1733 = vmul.f32 %v1696, 1.442695
    %v1734 = vpow.pop %v1733
    %v1735 = vmul.f32 %v1697, 1.442695
    %v1736 = vpow.pop %v1735
    %v1737 = vmul.f32 %v1698, 1.442695
    %v1738 = vpow.pop %v1737
    %v1739 = vmul.f32 %v1699, 1.442695
    %v1740 = vpow.pop %v1739
    %v1741 = vmul.f32 %v1700, 1.442695
    %v1742 = vpow.pop %v1741
    %v1743 = vmul.f32 %v1701, 1.442695
    %v1744 = vpow.pop %v1743
    %v1745 = vmul.f32 %v1702, 1.442695
    %v1746 = vpow.pop %v1745
    %v1747 = vmul.f32 %v1703, 1.442695
    %v1748 = vpow.pop %v1747
    %v1749 = vmul.f32 %v1704, 1.442695
    %v1750 = vpow.pop %v1749
    %v1751 = vmul.f32 %v1705, 1.442695
    %v1752 = vpow.pop %v1751
    %v1753 = vmul.f32 %v1706, 1.442695
    %v1754 = vpow.pop %v1753
    %v1755 = vmul.f32 %v1707, 1.442695
    %v1756 = vpow.pop %v1755
    %v1757 = vmul.f32 %v1708, 1.442695
    %v1758 = vpow.pop %v1757
    %v1759 = vmul.f32 %v1709, 1.442695
    %v1760 = vpow.pop %v1759
    %v1761 = vmul.f32 %v1710, 1.442695
    %v1762 = vpow.pop %v1761
    %v1763 = vmul.f32 %v1711, 1.442695
    %v1764 = vpow.pop %v1763
    %v1765 = vmul.f32 %v1712, 1.442695
    %v1766 = vpow.pop %v1765
    %v1767 = vmul.f32 %v1713, 1.442695
    %v1768 = vpow.pop %v1767
    %v1769 = vmul.f32 %v1714, 1.442695
    %v1770 = vpow.pop %v1769
    %v1771 = vmul.f32 %v1715, 1.442695
    %v1772 = vpow.pop %v1771
    %v1773 = vmul.f32 %v1716, 1.442695
    %v1774 = vpow.pop %v1773
    %v1775 = vmul.f32 %v1717, 1.442695
    %v1776 = vpow.pop %v1775
    %v1777 = vmul.f32 %v1718, 1.442695
    %v1778 = vpow.pop %v1777
    %v1779 = vmul.f32 %v1719, 1.442695
    %v1780 = vpow.pop %v1779
    %v1781 = vmul.f32 %v1720, 1.442695
    %v1782 = vpow.pop %v1781
    %v1783 = vmul.f32 %v1721, 1.442695
    %v1784 = vpow.pop %v1783
    %v1785 = vmul.f32 %v1722, 1.442695
    %v1786 = vpow.pop %v1785
    %v1787 = vadd.f32 %v1724, 1.0
    %v1788 = vadd.f32 %v1726, 1.0
    %v1789 = vadd.f32 %v1728, 1.0
    %v1790 = vadd.f32 %v1730, 1.0
    %v1791 = vadd.f32 %v1732, 1.0
    %v1792 = vadd.f32 %v1734, 1.0
    %v1793 = vadd.f32 %v1736, 1.0
    %v1794 = vadd.f32 %v1738, 1.0
    %v1795 = vadd.f32 %v1740, 1.0
    %v1796 = vadd.f32 %v1742, 1.0
    %v1797 = vadd.f32 %v1744, 1.0
    %v1798 = vadd.f32 %v1746, 1.0
    %v1799 = vadd.f32 %v1748, 1.0
    %v1800 = vadd.f32 %v1750, 1.0
    %v1801 = vadd.f32 %v1752, 1.0
    %v1802 = vadd.f32 %v1754, 1.0
    %v1803 = vadd.f32 %v1756, 1.0
    %v1804 = vadd.f32 %v1758, 1.0
    %v1805 = vadd.f32 %v1760, 1.0
    %v1806 = vadd.f32 %v1762, 1.0
    %v1807 = vadd.f32 %v1764, 1.0
    %v1808 = vadd.f32 %v1766, 1.0
    %v1809 = vadd.f32 %v1768, 1.0
    %v1810 = vadd.f32 %v1770, 1.0
    %v1811 = vadd.f32 %v1772, 1.0
    %v1812 = vadd.f32 %v1774, 1.0
    %v1813 = vadd.f32 %v1776, 1.0
    %v1814 = vadd.f32 %v1778, 1.0
    %v1815 = vadd.f32 %v1780, 1.0
    %v1816 = vadd.f32 %v1782, 1.0
    %v1817 = vadd.f32 %v1784, 1.0
    %v1818 = vadd.f32 %v1786, 1.0
    %v1819 = vrcp.pop %v1787
    %v1820 = vmul.f32 1.0, %v1819
    %v1821 = vrcp.pop %v1788
    %v1822 = vmul.f32 1.0, %v1821
    %v1823 = vrcp.pop %v1789
    %v1824 = vmul.f32 1.0, %v1823
    %v1825 = vrcp.pop %v1790
    %v1826 = vmul.f32 1.0, %v1825
    %v1827 = vrcp.pop %v1791
    %v1828 = vmul.f32 1.0, %v1827
    %v1829 = vrcp.pop %v1792
    %v1830 = vmul.f32 1.0, %v1829
    %v1831 = vrcp.pop %v1793
    %v1832 = vmul.f32 1.0, %v1831
    %v1833 = vrcp.pop %v1794
    %v1834 = vmul.f32 1.0, %v1833
    %v1835 = vrcp.pop %v1795
    %v1836 = vmul.f32 1.0, %v1835
    %v1837 = vrcp.pop %v1796
    %v1838 = vmul.f32 1.0, %v1837
    %v1839 = vrcp.pop %v1797
    %v1840 = vmul.f32 1.0, %v1839
    %v1841 = vrcp.pop %v1798
    %v1842 = vmul.f32 1.0, %v1841
    %v1843 = vrcp.pop %v1799
    %v1844 = vmul.f32 1.0, %v1843
    %v1845 = vrcp.pop %v1800
    %v1846 = vmul.f32 1.0, %v1845
    %v1847 = vrcp.pop %v1801
    %v1848 = vmul.f32 1.0, %v1847
    %v1849 = vrcp.pop %v1802
    %v1850 = vmul.f32 1.0, %v1849
    %v1851 = vrcp.pop %v1803
    %v1852 = vmul.f32 1.0, %v1851
    %v1853 = vrcp.pop %v1804
    %v1854 = vmul.f32 1.0, %v1853
    %v1855 = vrcp.pop %v1805
    %v1856 = vmul.f32 1.0, %v1855
    %v1857 = vrcp.pop %v1806
    %v1858 = vmul.f32 1.0, %v1857
    %v1859 = vrcp.pop %v1807
    %v1860 = vmul.f32 1.0, %v1859
    %v1861 = vrcp.pop %v1808
    %v1862 = vmul.f32 1.0, %v1861
    %v1863 = vrcp.pop %v1809
    %v1864 = vmul.f32 1.0, %v1863
    %v1865 = vrcp.pop %v1810
    %v1866 = vmul.f32 1.0, %v1865
    %v1867 = vrcp.pop %v1811
    %v1868 = vmul.f32 1.0, %v1867
    %v1869 = vrcp.pop %v1812
    %v1870 = vmul.f32 1.0, %v1869
    %v1871 = vrcp.pop %v1813
    %v1872 = vmul.f32 1.0, %v1871
    %v1873 = vrcp.pop %v1814
    %v1874 = vmul.f32 1.0, %v1873
    %v1875 = vrcp.pop %v1815
    %v1876 = vmul.f32 1.0, %v1875
    %v1877 = vrcp.pop %v1816
    %v1878 = vmul.f32 1.0, %v1877
    %v1879 = vrcp.pop %v1817
    %v1880 = vmul.f32 1.0, %v1879
    %v1881 = vrcp.pop %v1818
    %v1882 = vmul.f32 1.0, %v1881
    %v1883 = vsel %vm1690, %v1820, %v1562
    %v1884 = vsel %vm1690, %v1822, %v1565
    %v1885 = vsel %vm1690, %v1824, %v1570
    %v1886 = vsel %vm1690, %v1826, %v1573
    %v1887 = vsel %vm1690, %v1828, %v1578
    %v1888 = vsel %vm1690, %v1830, %v1581
    %v1889 = vsel %vm1690, %v1832, %v1586
    %v1890 = vsel %vm1690, %v1834, %v1589
    %v1891 = vsel %vm1690, %v1836, %v1594
    %v1892 = vsel %vm1690, %v1838, %v1597
    %v1893 = vsel %vm1690, %v1840, %v1602
    %v1894 = vsel %vm1690, %v1842, %v1605
    %v1895 = vsel %vm1690, %v1844, %v1610
    %v1896 = vsel %vm1690, %v1846, %v1613
    %v1897 = vsel %vm1690, %v1848, %v1618
    %v1898 = vsel %vm1690, %v1850, %v1621
    %v1899 = vsel %vm1690, %v1852, %v1626
    %v1900 = vsel %vm1690, %v1854, %v1629
    %v1901 = vsel %vm1690, %v1856, %v1634
    %v1902 = vsel %vm1690, %v1858, %v1637
    %v1903 = vsel %vm1690, %v1860, %v1642
    %v1904 = vsel %vm1690, %v1862, %v1645
    %v1905 = vsel %vm1690, %v1864, %v1650
    %v1906 = vsel %vm1690, %v1866, %v1653
    %v1907 = vsel %vm1690, %v1868, %v1658
    %v1908 = vsel %vm1690, %v1870, %v1661
    %v1909 = vsel %vm1690, %v1872, %v1666
    %v1910 = vsel %vm1690, %v1874, %v1669
    %v1911 = vsel %vm1690, %v1876, %v1674
    %v1912 = vsel %vm1690, %v1878, %v1677
    %v1913 = vsel %vm1690, %v1880, %v1682
    %v1914 = vsel %vm1690, %v1882, %v1685
    %v1915 = vpack.c.bf16 %v1884, %v1883
    %v1916 = vpack.c.bf16 %v1886, %v1885
    %v1917 = vpack.c.bf16 %v1888, %v1887
    %v1918 = vpack.c.bf16 %v1890, %v1889
    %v1919 = vpack.c.bf16 %v1892, %v1891
    %v1920 = vpack.c.bf16 %v1894, %v1893
    %v1921 = vpack.c.bf16 %v1896, %v1895
    %v1922 = vpack.c.bf16 %v1898, %v1897
    %v1923 = vpack.c.bf16 %v1900, %v1899
    %v1924 = vpack.c.bf16 %v1902, %v1901
    %v1925 = vpack.c.bf16 %v1904, %v1903
    %v1926 = vpack.c.bf16 %v1906, %v1905
    %v1927 = vpack.c.bf16 %v1908, %v1907
    %v1928 = vpack.c.bf16 %v1910, %v1909
    %v1929 = vpack.c.bf16 %v1912, %v1911
    %v1930 = vpack.c.bf16 %v1914, %v1913
    %v1947 = vunpack.c.l.b16 %v1915
    %v1948 = vunpack.c.h.b16 %v1915
    %v1949 = vunpack.c.l.b16 %v1916
    %v1950 = vunpack.c.h.b16 %v1916
    %v1951 = vunpack.c.l.b16 %v1917
    %v1952 = vunpack.c.h.b16 %v1917
    %v1953 = vunpack.c.l.b16 %v1918
    %v1954 = vunpack.c.h.b16 %v1918
    %v1955 = vunpack.c.l.b16 %v1919
    %v1956 = vunpack.c.h.b16 %v1919
    %v1957 = vunpack.c.l.b16 %v1920
    %v1958 = vunpack.c.h.b16 %v1920
    %v1959 = vunpack.c.l.b16 %v1921
    %v1960 = vunpack.c.h.b16 %v1921
    %v1961 = vunpack.c.l.b16 %v1922
    %v1962 = vunpack.c.h.b16 %v1922
    %v1963 = vunpack.c.l.b16 %v1923
    %v1964 = vunpack.c.h.b16 %v1923
    %v1965 = vunpack.c.l.b16 %v1924
    %v1966 = vunpack.c.h.b16 %v1924
    %v1967 = vunpack.c.l.b16 %v1925
    %v1968 = vunpack.c.h.b16 %v1925
    %v1969 = vunpack.c.l.b16 %v1926
    %v1970 = vunpack.c.h.b16 %v1926
    %v1971 = vunpack.c.l.b16 %v1927
    %v1972 = vunpack.c.h.b16 %v1927
    %v1973 = vunpack.c.l.b16 %v1928
    %v1974 = vunpack.c.h.b16 %v1928
    %v1975 = vunpack.c.l.b16 %v1929
    %v1976 = vunpack.c.h.b16 %v1929
    %v1977 = vunpack.c.l.b16 %v1930
    %v1978 = vunpack.c.h.b16 %v1930
    %v1979 = vpack.c.b16 %v1947, %v1947
    %v1980 = vpack.c.b16 %v1948, %v1948
    %v1981 = vpack.c.b16 %v1949, %v1949
    %v1982 = vpack.c.b16 %v1950, %v1950
    %v1983 = vpack.c.b16 %v1951, %v1951
    %v1984 = vpack.c.b16 %v1952, %v1952
    %v1985 = vpack.c.b16 %v1953, %v1953
    %v1986 = vpack.c.b16 %v1954, %v1954
    %v1987 = vpack.c.b16 %v1955, %v1955
    %v1988 = vpack.c.b16 %v1956, %v1956
    %v1989 = vpack.c.b16 %v1957, %v1957
    %v1990 = vpack.c.b16 %v1958, %v1958
    %v1991 = vpack.c.b16 %v1959, %v1959
    %v1992 = vpack.c.b16 %v1960, %v1960
    %v1993 = vpack.c.b16 %v1961, %v1961
    %v1994 = vpack.c.b16 %v1962, %v1962
    %v1995 = vpack.c.b16 %v1963, %v1963
    %v1996 = vpack.c.b16 %v1964, %v1964
    %v1997 = vpack.c.b16 %v1965, %v1965
    %v1998 = vpack.c.b16 %v1966, %v1966
    %v1999 = vpack.c.b16 %v1967, %v1967
    %v2000 = vpack.c.b16 %v1968, %v1968
    %v2001 = vpack.c.b16 %v1969, %v1969
    %v2002 = vpack.c.b16 %v1970, %v1970
    %v2003 = vpack.c.b16 %v1971, %v1971
    %v2004 = vpack.c.b16 %v1972, %v1972
    %v2005 = vpack.c.b16 %v1973, %v1973
    %v2006 = vpack.c.b16 %v1974, %v1974
    %v2007 = vpack.c.b16 %v1975, %v1975
    %v2008 = vpack.c.b16 %v1976, %v1976
    %v2009 = vpack.c.b16 %v1977, %v1977
    %v2010 = vpack.c.b16 %v1978, %v1978
    %2043 = vst [vmem:[%s3] sm:$0xf] %v1979
    %2044 = vst [vmem:[%s3 + $0x4] sm:$0xf] %v1980
    %2045 = vst [vmem:[%s3 + $0x8] sm:$0xf] %v1981
    %2046 = vst [vmem:[%s3 + $0xc] sm:$0xf] %v1982
    %2047 = vst [vmem:[%s3 + $0x10] sm:$0xf] %v1983
    %2048 = vst [vmem:[%s3 + $0x14] sm:$0xf] %v1984
    %2049 = vst [vmem:[%s3 + $0x18] sm:$0xf] %v1985
    %2050 = vst [vmem:[%s3 + $0x1c] sm:$0xf] %v1986
    %2051 = vst [vmem:[%s3 + $0x20] sm:$0xf] %v1987
    %2052 = vst [vmem:[%s3 + $0x24] sm:$0xf] %v1988
    %2053 = vst [vmem:[%s3 + $0x28] sm:$0xf] %v1989
    %2054 = vst [vmem:[%s3 + $0x2c] sm:$0xf] %v1990
    %2055 = vst [vmem:[%s3 + $0x30] sm:$0xf] %v1991
    %2056 = vst [vmem:[%s3 + $0x34] sm:$0xf] %v1992
    %2057 = vst [vmem:[%s3 + $0x38] sm:$0xf] %v1993
    %2058 = vst [vmem:[%s3 + $0x3c] sm:$0xf] %v1994
    %2059 = vst [vmem:[%s3 + $0x40] sm:$0xf] %v1995
    %2060 = vst [vmem:[%s3 + $0x44] sm:$0xf] %v1996
    %2061 = vst [vmem:[%s3 + $0x48] sm:$0xf] %v1997
    %2062 = vst [vmem:[%s3 + $0x4c] sm:$0xf] %v1998
    %2063 = vst [vmem:[%s3 + $0x50] sm:$0xf] %v1999
    %2064 = vst [vmem:[%s3 + $0x54] sm:$0xf] %v2000
    %2065 = vst [vmem:[%s3 + $0x58] sm:$0xf] %v2001
    %2066 = vst [vmem:[%s3 + $0x5c] sm:$0xf] %v2002
    %2067 = vst [vmem:[%s3 + $0x60] sm:$0xf] %v2003
    %2068 = vst [vmem:[%s3 + $0x64] sm:$0xf] %v2004
    %2069 = vst [vmem:[%s3 + $0x68] sm:$0xf] %v2005
    %2070 = vst [vmem:[%s3 + $0x6c] sm:$0xf] %v2006
    %2071 = vst [vmem:[%s3 + $0x70] sm:$0xf] %v2007
    %2072 = vst [vmem:[%s3 + $0x74] sm:$0xf] %v2008
    %2073 = vst [vmem:[%s3 + $0x78] sm:$0xf] %v2009
    %2074 = vst [vmem:[%s3 + $0x7c] sm:$0xf] %v2010
    // Predicated region
    $region18: #{cub_encoder_forward.1} parent=1 // pred_check
      _
    $region19: #{cub_encoder_forward.1} parent=1 // pred_check_branch
      %2076 = sbr.rel (0) target = $region21
    $region20: #{cub_encoder_forward.1} parent=1 // pred_region
      _
    $region21: #{cub_encoder_forward.1} parent=1 // pred_fallthru
      _
    // Predicated region
    $region22: #{cub_encoder_forward.1} parent=1 // pred_check
      _
    $region23: #{cub_encoder_forward.1} parent=1 // pred_check_branch
      %2078 = sbr.rel (0) target = $region25
    $region24: #{cub_encoder_forward.1} parent=1 // pred_region
      _
    $region25: #{cub_encoder_forward.1} parent=1 // pred_fallthru
      _
    %2079 = vsyncpa [#allocation3], 1

</llo_original>
